<compile_context>
chip_gen: v7x
topology: tpu7x:2x2x1
jax: 0.10.0
libtpu: 0.0.40
codegen_flags: <defaults>
</compile_context>

<pallas_src>
import functools
import math

import jax
import jax.numpy as jnp
from jax import lax
from jax.experimental import pallas as pl
from jax.experimental.pallas import tpu as pltpu

_LN_EPS = 1e-5
_NEG_BIG = -1e9


def _gelu(x):
    # matches the PyTorch tanh-approximation gelu in the source module
    return 0.5 * x * (1.0 + jnp.tanh(math.sqrt(2.0 / math.pi) * (x + 0.044715 * x * x * x)))


def _layer_norm(x, gamma, beta):
    mu = jnp.mean(x, axis=-1, keepdims=True)
    var = jnp.mean((x - mu) ** 2, axis=-1, keepdims=True)
    return (x - mu) * lax.rsqrt(var + _LN_EPS) * gamma + beta


def _block_kernel(len_ref,                                   # scalar-prefetch: [B] int32 (SMEM)
                  x_ref,                                     # [bt*T, D] bf16
                  wqkv_ref, bqkv_ref,                        # [D, 3D] bf16, [1, 3D] f32
                  wo_ref, bo_ref,                            # [D, D] bf16, [1, D] f32
                  g1_ref, be1_ref,                           # LayerNorm 1
                  wfc_ref, bfc_ref, wpr_ref, bpr_ref,        # MLP
                  g2_ref, be2_ref,                           # LayerNorm 2
                  out_ref,                                   # [bt*T, D] f32
                  ctx_ref,                                   # scratch: [bt*T, D] f32 (merged heads)
                  *, n_head, scale, seq_len, batch_tile):
    T = seq_len
    bt = batch_tile
    D = x_ref.shape[-1]
    dh = D // n_head
    b0 = pl.program_id(0) * bt                  # first batch row handled by this grid step
    bf16 = jnp.bfloat16

    x = x_ref[...]                              # [bt*T, D] bf16

    # ---- fused QKV projection: one full-width MXU pass (instead of 3*H narrow ones) ----
    qkv = jnp.dot(x, wqkv_ref[...], preferred_element_type=jnp.float32) + bqkv_ref[...]
    q = qkv[:, 0 * D:1 * D]
    k = qkv[:, 1 * D:2 * D]
    v = qkv[:, 2 * D:3 * D]
    if scale:
        q = q * (1.0 / math.sqrt(dh))           # scale q once; never touch the [T,T] scores

    row_ids = lax.broadcasted_iota(jnp.int32, (T, T), 0)
    col_ids = lax.broadcasted_iota(jnp.int32, (T, T), 1)
    flat_ids = lax.broadcasted_iota(jnp.int32, (bt * T, D), 0)

    valid = None
    for r in range(bt):                         # batch rows in this tile (small, unrolled)
        L = len_ref[b0 + r]
        mask = jnp.logical_and(row_ids < L, col_ids < L)           # [T, T] bool
        vr = jnp.logical_and(flat_ids >= r * T, flat_ids < r * T + L)
        valid = vr if valid is None else jnp.logical_or(valid, vr)

        rows = slice(r * T, (r + 1) * T)
        q_r, k_r, v_r = q[rows], k[rows], v[rows]
        # Per-head softmax attention (the score/softmax math is inherently per-head;
        # the projections around it stay fused).  Head context tiles are written
        # straight into the scratch so the merge projection is one big matmul.
        for h in range(n_head):
            sl = slice(h * dh, (h + 1) * dh)
            qh = q_r[:, sl].astype(bf16)
            kh = k_r[:, sl].astype(bf16)
            vh = v_r[:, sl].astype(bf16)
            s = lax.dot_general(qh, kh, (((1,), (1,)), ((), ())),
                                preferred_element_type=jnp.float32)     # [T, T]
            s = jnp.where(mask, s, _NEG_BIG)
            s = s - jnp.max(s, axis=-1, keepdims=True)
            p = jnp.exp(s)
            p = p * pl.reciprocal(jnp.sum(p, axis=-1, keepdims=True), approx=True)
            p = jnp.where(mask, p, 0.0)         # zero padded rows too (as in torch)
            ctx_ref[rows, sl] = jnp.dot(p.astype(bf16), vh,
                                        preferred_element_type=jnp.float32)

    # ---- fused merge-head projection: one [bt*T, D] x [D, D] matmul ----
    a_out = jnp.dot(ctx_ref[...].astype(bf16), wo_ref[...],
                    preferred_element_type=jnp.float32) + bo_ref[...]

    # ---- residual + SeqLayerNorm 1 (rows >= length zeroed, per pack/unpack) ----
    n1 = _layer_norm(x.astype(jnp.float32) + a_out, g1_ref[...], be1_ref[...])
    n1 = jnp.where(valid, n1, 0.0)

    # ---- MLP: Conv1D -> gelu -> Conv1D ----
    hfc = jnp.dot(n1.astype(bf16), wfc_ref[...],
                  preferred_element_type=jnp.float32) + bfc_ref[...]
    m = jnp.dot(_gelu(hfc).astype(bf16), wpr_ref[...],
                preferred_element_type=jnp.float32) + bpr_ref[...]

    # ---- residual + SeqLayerNorm 2 ----
    h2 = _layer_norm(n1 + m, g2_ref[...], be2_ref[...])
    h2 = jnp.where(valid, h2, 0.0)
    out_ref[...] = h2.astype(out_ref.dtype)


def block_forward_pallas(x, lengths, params, n_head, scale, batch_tile=None):
    B, T, D = x.shape
    if batch_tile is None:
        batch_tile = next(b for b in (8, 4, 2, 1) if B % b == 0)
    bt = batch_tile
    assert B % bt == 0

    bf16, f32 = jnp.bfloat16, jnp.float32
    # Weights in bf16 (MXU-native, half the DMA bytes); biases / LN params stay f32.
    w_qkv = params["w_qkv"].astype(bf16)                      # [D, 3D]
    b_qkv = params["b_qkv"].astype(f32).reshape(1, 3 * D)
    w_ao = params["w_ao"].astype(bf16)                        # [D, D]
    b_ao = params["b_ao"].astype(f32).reshape(1, D)
    g1 = params["g1"].astype(f32).reshape(1, D)
    be1 = params["be1"].astype(f32).reshape(1, D)
    w_fc = params["w_fc"].astype(bf16)                        # [D, 4D]
    b_fc = params["b_fc"].astype(f32).reshape(1, 4 * D)
    w_pr = params["w_pr"].astype(bf16)                        # [4D, D]
    b_pr = params["b_pr"].astype(f32).reshape(1, D)
    g2 = params["g2"].astype(f32).reshape(1, D)
    be2 = params["be2"].astype(f32).reshape(1, D)

    operands = (w_qkv, b_qkv, w_ao, b_ao, g1, be1, w_fc, b_fc, w_pr, b_pr, g2, be2)

    # Flatten (B, T) -> rows: each grid step gets a dense 2-D [bt*T, D] slab.
    x2d = x.reshape(B * T, D).astype(bf16)
    lengths = lengths.astype(jnp.int32)

    def const_spec(shape):
        nd = len(shape)
        return pl.BlockSpec(shape, lambda b, lens, nd=nd: (0,) * nd)

    in_specs = [pl.BlockSpec((bt * T, D), lambda b, lens: (b, 0))]
    in_specs += [const_spec(o.shape) for o in operands]

    grid_spec = pltpu.PrefetchScalarGridSpec(
        num_scalar_prefetch=1,
        grid=(B // bt,),
        in_specs=in_specs,
        out_specs=pl.BlockSpec((bt * T, D), lambda b, lens: (b, 0)),
        scratch_shapes=[pltpu.VMEM((bt * T, D), jnp.float32)],   # merged-head context
    )

    kernel = functools.partial(_block_kernel, n_head=n_head, scale=scale,
                               seq_len=T, batch_tile=bt)
    out = pl.pallas_call(
        kernel,
        out_shape=jax.ShapeDtypeStruct((B * T, D), jnp.float32),
        grid_spec=grid_spec,
        compiler_params=pltpu.CompilerParams(
            dimension_semantics=("parallel",),        # independent batch tiles (v7x megacore)
            vmem_limit_bytes=32 * 1024 * 1024),
    )(lengths, x2d, *operands)

    # Full-T output (rows >= length are zero).  The caller trims to max(lengths)
    # host-side, so this wrapper stays jit-friendly (no device->host sync).
    return out.reshape(B, T, D)


def block_forward_ref(x, lengths, params, n_head, scale):
    """Pure-JAX reference mirroring the PyTorch Block forward, with matmul
    operands rounded to bf16 exactly like the kernel (f32 accumulation)."""
    B, T, D = x.shape
    H = n_head
    dh = D // H
    bf16, f32 = jnp.bfloat16, jnp.float32

    def mm(a, b):
        return jnp.dot(a.astype(bf16), b.astype(bf16), preferred_element_type=f32)

    xr = x.astype(bf16).astype(f32)
    qkv = mm(xr, params["w_qkv"]) + params["b_qkv"]
    q, k, v = jnp.split(qkv, 3, axis=-1)
    if scale:
        q = q * (1.0 / math.sqrt(dh))
    sh = lambda t: t.reshape(B, T, H, dh).transpose(0, 2, 1, 3)
    qh, kh, vh = sh(q), sh(k), sh(v)
    w = jnp.einsum("bhtd,bhsd->bhts", qh.astype(bf16), kh.astype(bf16),
                   preferred_element_type=f32)
    row = jnp.arange(T)[None, None, :, None]
    col = jnp.arange(T)[None, None, None, :]
    ln_b = lengths[:, None, None, None]
    mask = (row < ln_b) & (col < ln_b)
    w = jnp.where(mask, w, _NEG_BIG)
    w = jax.nn.softmax(w, axis=-1)
    w = jnp.where(mask, w, 0.0)
    a = jnp.einsum("bhts,bhsd->bhtd", w.astype(bf16), vh.astype(bf16),
                   preferred_element_type=f32)
    a = a.transpose(0, 2, 1, 3).reshape(B, T, D)
    a = mm(a, params["w_ao"]) + params["b_ao"]

    valid = jnp.arange(T)[None, :, None] < lengths[:, None, None]
    n = jnp.where(valid, _layer_norm(xr + a, params["g1"], params["be1"]), 0.0)
    m = mm(_gelu(mm(n, params["w_fc"]) + params["b_fc"]), params["w_pr"]) + params["b_pr"]
    h = jnp.where(valid, _layer_norm(n + m, params["g2"], params["be2"]), 0.0)
    return h


def init_params(key, d_in):
    """Deterministic synthetic init (xavier-uniform weights, uniform(-0.01,0.01) biases)."""
    D = d_in
    ks = jax.random.split(key, 8)

    def xavier(k, shape):
        lim = math.sqrt(6.0 / (shape[0] + shape[1]))
        return jax.random.uniform(k, shape, jnp.float32, -lim, lim)

    def bias(k, n):
        return jax.random.uniform(k, (n,), jnp.float32, -0.01, 0.01)

    return {
        "w_qkv": xavier(ks[0], (D, 3 * D)), "b_qkv": bias(ks[1], 3 * D),
        "w_ao": xavier(ks[2], (D, D)),      "b_ao": bias(ks[3], D),
        "g1": jnp.ones((D,), jnp.float32),  "be1": jnp.zeros((D,), jnp.float32),
        "w_fc": xavier(ks[4], (D, 4 * D)),  "b_fc": bias(ks[5], 4 * D),
        "w_pr": xavier(ks[6], (4 * D, D)),  "b_pr": bias(ks[7], D),
        "g2": jnp.ones((D,), jnp.float32),  "be2": jnp.zeros((D,), jnp.float32),
    }


if __name__ == "__main__":
    B, T, D, H = 2, 8, 32, 4          # Block(d_in=32, n_head=4, ..., scale=True)
    scale = True
    key = jax.random.PRNGKey(0)
    k_x, k_p = jax.random.split(key)
    x = jax.random.normal(k_x, (B, T, D), jnp.float32)
    lengths_list = [8, 5]
    lengths = jnp.array(lengths_list, dtype=jnp.int32)
    params = init_params(k_p, D)

    out = block_forward_pallas(x, lengths, params, n_head=H, scale=scale)
    out = jax.block_until_ready(out)

    ref = block_forward_ref(x, lengths, params, n_head=H, scale=scale)

    # SeqLayerNorm's unpack pads only to max(lengths); trim host-side (no device sync).
    max_l = max(lengths_list)
    out_t = out[:, :max_l, :]
    ref_t = ref[:, :max_l, :]
    assert out_t.shape == ref_t.shape, (out_t.shape, ref_t.shape)
    max_err = float(jnp.max(jnp.abs(out_t - ref_t)))
    # Tolerance covers the approximate-reciprocal softmax normalization and tiny
    # accumulation-order differences; matmul operand rounding (bf16) is mirrored
    # in the reference.
    assert jnp.allclose(out_t, ref_t, atol=1e-2, rtol=1e-2), f"max abs err {max_err}"
    print("KERNEL_OK")
</pallas_src>

<mosaic_0001>
module attributes {stable_mosaic.version = 11 : i64} {
  func.func @_block_kernel(%arg0: i32, %arg1: memref<2xi32, #tpu.memory_space<smem>>, %arg2: memref<16x32xbf16, #tpu.memory_space<vmem>>, %arg3: memref<32x96xbf16, #tpu.memory_space<vmem>>, %arg4: memref<1x96xf32, #tpu.memory_space<vmem>>, %arg5: memref<32x32xbf16, #tpu.memory_space<vmem>>, %arg6: memref<1x32xf32, #tpu.memory_space<vmem>>, %arg7: memref<1x32xf32, #tpu.memory_space<vmem>>, %arg8: memref<1x32xf32, #tpu.memory_space<vmem>>, %arg9: memref<32x128xbf16, #tpu.memory_space<vmem>>, %arg10: memref<1x128xf32, #tpu.memory_space<vmem>>, %arg11: memref<128x32xbf16, #tpu.memory_space<vmem>>, %arg12: memref<1x32xf32, #tpu.memory_space<vmem>>, %arg13: memref<1x32xf32, #tpu.memory_space<vmem>>, %arg14: memref<1x32xf32, #tpu.memory_space<vmem>>, %arg15: memref<16x32xf32, #tpu.memory_space<vmem>>, %arg16: memref<16x32xf32, #tpu.memory_space<vmem>>) attributes {dimension_semantics = [#tpu.dimension_semantics<parallel>], iteration_bounds = array<i64: 1>, scalar_prefetch = 1 : i64, scratch_operands = 1 : i64, tpu.core_type = #tpu.core_type<tc>, window_params = [{transform_indices = @transform_0, window_bounds = array<i64: 16, 32>}, {pipeline_mode = #tpu.pipeline_mode<synchronous>, transform_indices = @transform_1, window_bounds = array<i64: 32, 96>}, {pipeline_mode = #tpu.pipeline_mode<synchronous>, transform_indices = @transform_2, window_bounds = array<i64: 1, 96>}, {pipeline_mode = #tpu.pipeline_mode<synchronous>, transform_indices = @transform_3, window_bounds = array<i64: 32, 32>}, {pipeline_mode = #tpu.pipeline_mode<synchronous>, transform_indices = @transform_4, window_bounds = array<i64: 1, 32>}, {pipeline_mode = #tpu.pipeline_mode<synchronous>, transform_indices = @transform_5, window_bounds = array<i64: 1, 32>}, {pipeline_mode = #tpu.pipeline_mode<synchronous>, transform_indices = @transform_6, window_bounds = array<i64: 1, 32>}, {pipeline_mode = #tpu.pipeline_mode<synchronous>, transform_indices = @transform_7, window_bounds = array<i64: 32, 128>}, {pipeline_mode = #tpu.pipeline_mode<synchronous>, transform_indices = @transform_8, window_bounds = array<i64: 1, 128>}, {pipeline_mode = #tpu.pipeline_mode<synchronous>, transform_indices = @transform_9, window_bounds = array<i64: 128, 32>}, {pipeline_mode = #tpu.pipeline_mode<synchronous>, transform_indices = @transform_10, window_bounds = array<i64: 1, 32>}, {pipeline_mode = #tpu.pipeline_mode<synchronous>, transform_indices = @transform_11, window_bounds = array<i64: 1, 32>}, {pipeline_mode = #tpu.pipeline_mode<synchronous>, transform_indices = @transform_12, window_bounds = array<i64: 1, 32>}, {transform_indices = @transform_13, window_bounds = array<i64: 16, 32>}]} {
    %c2_i32 = arith.constant 2 : i32
    %0 = arith.muli %arg0, %c2_i32 : i32
    %c0 = arith.constant 0 : index
    %c0_0 = arith.constant 0 : index
    %1 = vector.load %arg2[%c0, %c0_0] : memref<16x32xbf16, #tpu.memory_space<vmem>>, vector<16x32xbf16>
    %c0_1 = arith.constant 0 : index
    %c0_2 = arith.constant 0 : index
    %2 = vector.load %arg3[%c0_1, %c0_2] : memref<32x96xbf16, #tpu.memory_space<vmem>>, vector<32x96xbf16>
    %cst = arith.constant dense<0.000000e+00> : vector<16x96xf32>
    %3 = tpu.matmul %1, %2, %cst {dimension_numbers = #tpu.dot_dimension_numbers<[1], [0], [0], [1], [0, 0, 1, 1], [], []>} : vector<16x32xbf16>, vector<32x96xbf16>, vector<16x96xf32> -> vector<16x96xf32>
    %c0_3 = arith.constant 0 : index
    %c0_4 = arith.constant 0 : index
    %4 = vector.load %arg4[%c0_3, %c0_4] : memref<1x96xf32, #tpu.memory_space<vmem>>, vector<1x96xf32>
    %5 = vector.broadcast %4 : vector<1x96xf32> to vector<16x96xf32>
    %6 = arith.addf %3, %5 : vector<16x96xf32>
    %7 = vector.extract_strided_slice %6 {offsets = [0, 0], sizes = [16, 32], strides = [1, 1]} : vector<16x96xf32> to vector<16x32xf32>
    %8 = vector.extract_strided_slice %6 {offsets = [0, 32], sizes = [16, 32], strides = [1, 1]} : vector<16x96xf32> to vector<16x32xf32>
    %9 = vector.extract_strided_slice %6 {offsets = [0, 64], sizes = [16, 32], strides = [1, 1]} : vector<16x96xf32> to vector<16x32xf32>
    %cst_5 = arith.constant 0.353553385 : f32
    %10 = vector.broadcast %cst_5 : f32 to vector<16x32xf32>
    %11 = arith.mulf %7, %10 : vector<16x32xf32>
    %12 = tpu.iota {dimensions = array<i32: 0>} : vector<8x8xi32>
    %13 = tpu.iota {dimensions = array<i32: 1>} : vector<8x8xi32>
    %14 = tpu.iota {dimensions = array<i32: 0>} : vector<16x32xi32>
    %c0_i32 = arith.constant 0 : i32
    %15 = arith.addi %0, %c0_i32 : i32
    %16 = arith.index_cast %15 : i32 to index
    %17 = memref.load %arg1[%16] : memref<2xi32, #tpu.memory_space<smem>>
    %18 = vector.broadcast %17 : i32 to vector<8x8xi32>
    %19 = arith.cmpi slt, %12, %18 : vector<8x8xi32>
    %20 = vector.broadcast %17 : i32 to vector<8x8xi32>
    %21 = arith.cmpi slt, %13, %20 : vector<8x8xi32>
    %22 = arith.andi %19, %21 : vector<8x8xi1>
    %c0_i32_6 = arith.constant 0 : i32
    %23 = vector.broadcast %c0_i32_6 : i32 to vector<16x32xi32>
    %24 = arith.cmpi sge, %14, %23 : vector<16x32xi32>
    %c0_i32_7 = arith.constant 0 : i32
    %25 = arith.addi %c0_i32_7, %17 : i32
    %26 = vector.broadcast %25 : i32 to vector<16x32xi32>
    %27 = arith.cmpi slt, %14, %26 : vector<16x32xi32>
    %28 = arith.andi %24, %27 : vector<16x32xi1>
    %29 = vector.extract_strided_slice %11 {offsets = [0, 0], sizes = [8, 32], strides = [1, 1]} : vector<16x32xf32> to vector<8x32xf32>
    %30 = vector.extract_strided_slice %8 {offsets = [0, 0], sizes = [8, 32], strides = [1, 1]} : vector<16x32xf32> to vector<8x32xf32>
    %31 = vector.extract_strided_slice %9 {offsets = [0, 0], sizes = [8, 32], strides = [1, 1]} : vector<16x32xf32> to vector<8x32xf32>
    %32 = vector.extract_strided_slice %29 {offsets = [0, 0], sizes = [8, 8], strides = [1, 1]} : vector<8x32xf32> to vector<8x8xf32>
    %33 = arith.truncf %32 : vector<8x8xf32> to vector<8x8xbf16>
    %34 = vector.extract_strided_slice %30 {offsets = [0, 0], sizes = [8, 8], strides = [1, 1]} : vector<8x32xf32> to vector<8x8xf32>
    %35 = arith.truncf %34 : vector<8x8xf32> to vector<8x8xbf16>
    %36 = vector.extract_strided_slice %31 {offsets = [0, 0], sizes = [8, 8], strides = [1, 1]} : vector<8x32xf32> to vector<8x8xf32>
    %37 = arith.truncf %36 : vector<8x8xf32> to vector<8x8xbf16>
    %cst_8 = arith.constant dense<0.000000e+00> : vector<8x8xf32>
    %38 = tpu.matmul %33, %35, %cst_8 {dimension_numbers = #tpu.dot_dimension_numbers<[1], [1], [0], [0], [0, 0, 1, 0], [], []>} : vector<8x8xbf16>, vector<8x8xbf16>, vector<8x8xf32> -> vector<8x8xf32>
    %cst_9 = arith.constant -1.000000e+09 : f32
    %39 = vector.broadcast %cst_9 : f32 to vector<8x8xf32>
    %40 = arith.select %22, %38, %39 : vector<8x8xi1>, vector<8x8xf32>
    %cst_10 = arith.constant dense<0xFF800000> : vector<8xf32>
    %41 = vector.multi_reduction <maximumf>, %40, %cst_10 [1] : vector<8x8xf32> to vector<8xf32>
    %42 = vector.shape_cast %41 : vector<8xf32> to vector<8x1xf32>
    %43 = vector.broadcast %42 : vector<8x1xf32> to vector<8x8xf32>
    %44 = arith.subf %40, %43 : vector<8x8xf32>
    %45 = math.exp %44 : vector<8x8xf32>
    %cst_11 = arith.constant dense<0.000000e+00> : vector<8xf32>
    %46 = vector.multi_reduction <add>, %45, %cst_11 [1] : vector<8x8xf32> to vector<8xf32>
    %47 = vector.shape_cast %46 : vector<8xf32> to vector<8x1xf32>
    %48 = tpu.reciprocal %47 {approx = true} : vector<8x1xf32> -> vector<8x1xf32>
    %49 = vector.broadcast %48 : vector<8x1xf32> to vector<8x8xf32>
    %50 = arith.mulf %45, %49 : vector<8x8xf32>
    %cst_12 = arith.constant 0.000000e+00 : f32
    %51 = vector.broadcast %cst_12 : f32 to vector<8x8xf32>
    %52 = arith.select %22, %50, %51 : vector<8x8xi1>, vector<8x8xf32>
    %53 = arith.truncf %52 : vector<8x8xf32> to vector<8x8xbf16>
    %cst_13 = arith.constant dense<0.000000e+00> : vector<8x8xf32>
    %54 = tpu.matmul %53, %37, %cst_13 {dimension_numbers = #tpu.dot_dimension_numbers<[1], [0], [0], [1], [0, 0, 1, 1], [], []>} : vector<8x8xbf16>, vector<8x8xbf16>, vector<8x8xf32> -> vector<8x8xf32>
    %c0_14 = arith.constant 0 : index
    %c0_15 = arith.constant 0 : index
    %55 = vector.load %arg16[%c0_14, %c0_15] : memref<16x32xf32, #tpu.memory_space<vmem>>, vector<8x8xf32>
    tpu.vector_store %arg16[%c0_14, %c0_15], %54 {strides = array<i32>} : memref<16x32xf32, #tpu.memory_space<vmem>>, vector<8x8xf32>,
    %56 = vector.extract_strided_slice %29 {offsets = [0, 8], sizes = [8, 8], strides = [1, 1]} : vector<8x32xf32> to vector<8x8xf32>
    %57 = arith.truncf %56 : vector<8x8xf32> to vector<8x8xbf16>
    %58 = vector.extract_strided_slice %30 {offsets = [0, 8], sizes = [8, 8], strides = [1, 1]} : vector<8x32xf32> to vector<8x8xf32>
    %59 = arith.truncf %58 : vector<8x8xf32> to vector<8x8xbf16>
    %60 = vector.extract_strided_slice %31 {offsets = [0, 8], sizes = [8, 8], strides = [1, 1]} : vector<8x32xf32> to vector<8x8xf32>
    %61 = arith.truncf %60 : vector<8x8xf32> to vector<8x8xbf16>
    %cst_16 = arith.constant dense<0.000000e+00> : vector<8x8xf32>
    %62 = tpu.matmul %57, %59, %cst_16 {dimension_numbers = #tpu.dot_dimension_numbers<[1], [1], [0], [0], [0, 0, 1, 0], [], []>} : vector<8x8xbf16>, vector<8x8xbf16>, vector<8x8xf32> -> vector<8x8xf32>
    %cst_17 = arith.constant -1.000000e+09 : f32
    %63 = vector.broadcast %cst_17 : f32 to vector<8x8xf32>
    %64 = arith.select %22, %62, %63 : vector<8x8xi1>, vector<8x8xf32>
    %cst_18 = arith.constant dense<0xFF800000> : vector<8xf32>
    %65 = vector.multi_reduction <maximumf>, %64, %cst_18 [1] : vector<8x8xf32> to vector<8xf32>
    %66 = vector.shape_cast %65 : vector<8xf32> to vector<8x1xf32>
    %67 = vector.broadcast %66 : vector<8x1xf32> to vector<8x8xf32>
    %68 = arith.subf %64, %67 : vector<8x8xf32>
    %69 = math.exp %68 : vector<8x8xf32>
    %cst_19 = arith.constant dense<0.000000e+00> : vector<8xf32>
    %70 = vector.multi_reduction <add>, %69, %cst_19 [1] : vector<8x8xf32> to vector<8xf32>
    %71 = vector.shape_cast %70 : vector<8xf32> to vector<8x1xf32>
    %72 = tpu.reciprocal %71 {approx = true} : vector<8x1xf32> -> vector<8x1xf32>
    %73 = vector.broadcast %72 : vector<8x1xf32> to vector<8x8xf32>
    %74 = arith.mulf %69, %73 : vector<8x8xf32>
    %cst_20 = arith.constant 0.000000e+00 : f32
    %75 = vector.broadcast %cst_20 : f32 to vector<8x8xf32>
    %76 = arith.select %22, %74, %75 : vector<8x8xi1>, vector<8x8xf32>
    %77 = arith.truncf %76 : vector<8x8xf32> to vector<8x8xbf16>
    %cst_21 = arith.constant dense<0.000000e+00> : vector<8x8xf32>
    %78 = tpu.matmul %77, %61, %cst_21 {dimension_numbers = #tpu.dot_dimension_numbers<[1], [0], [0], [1], [0, 0, 1, 1], [], []>} : vector<8x8xbf16>, vector<8x8xbf16>, vector<8x8xf32> -> vector<8x8xf32>
    %c0_22 = arith.constant 0 : index
    %c8 = arith.constant 8 : index
    %79 = vector.load %arg16[%c0_22, %c8] : memref<16x32xf32, #tpu.memory_space<vmem>>, vector<8x8xf32>
    tpu.vector_store %arg16[%c0_22, %c8], %78 {strides = array<i32>} : memref<16x32xf32, #tpu.memory_space<vmem>>, vector<8x8xf32>,
    %80 = vector.extract_strided_slice %29 {offsets = [0, 16], sizes = [8, 8], strides = [1, 1]} : vector<8x32xf32> to vector<8x8xf32>
    %81 = arith.truncf %80 : vector<8x8xf32> to vector<8x8xbf16>
    %82 = vector.extract_strided_slice %30 {offsets = [0, 16], sizes = [8, 8], strides = [1, 1]} : vector<8x32xf32> to vector<8x8xf32>
    %83 = arith.truncf %82 : vector<8x8xf32> to vector<8x8xbf16>
    %84 = vector.extract_strided_slice %31 {offsets = [0, 16], sizes = [8, 8], strides = [1, 1]} : vector<8x32xf32> to vector<8x8xf32>
    %85 = arith.truncf %84 : vector<8x8xf32> to vector<8x8xbf16>
    %cst_23 = arith.constant dense<0.000000e+00> : vector<8x8xf32>
    %86 = tpu.matmul %81, %83, %cst_23 {dimension_numbers = #tpu.dot_dimension_numbers<[1], [1], [0], [0], [0, 0, 1, 0], [], []>} : vector<8x8xbf16>, vector<8x8xbf16>, vector<8x8xf32> -> vector<8x8xf32>
    %cst_24 = arith.constant -1.000000e+09 : f32
    %87 = vector.broadcast %cst_24 : f32 to vector<8x8xf32>
    %88 = arith.select %22, %86, %87 : vector<8x8xi1>, vector<8x8xf32>
    %cst_25 = arith.constant dense<0xFF800000> : vector<8xf32>
    %89 = vector.multi_reduction <maximumf>, %88, %cst_25 [1] : vector<8x8xf32> to vector<8xf32>
    %90 = vector.shape_cast %89 : vector<8xf32> to vector<8x1xf32>
    %91 = vector.broadcast %90 : vector<8x1xf32> to vector<8x8xf32>
    %92 = arith.subf %88, %91 : vector<8x8xf32>
    %93 = math.exp %92 : vector<8x8xf32>
    %cst_26 = arith.constant dense<0.000000e+00> : vector<8xf32>
    %94 = vector.multi_reduction <add>, %93, %cst_26 [1] : vector<8x8xf32> to vector<8xf32>
    %95 = vector.shape_cast %94 : vector<8xf32> to vector<8x1xf32>
    %96 = tpu.reciprocal %95 {approx = true} : vector<8x1xf32> -> vector<8x1xf32>
    %97 = vector.broadcast %96 : vector<8x1xf32> to vector<8x8xf32>
    %98 = arith.mulf %93, %97 : vector<8x8xf32>
    %cst_27 = arith.constant 0.000000e+00 : f32
    %99 = vector.broadcast %cst_27 : f32 to vector<8x8xf32>
    %100 = arith.select %22, %98, %99 : vector<8x8xi1>, vector<8x8xf32>
    %101 = arith.truncf %100 : vector<8x8xf32> to vector<8x8xbf16>
    %cst_28 = arith.constant dense<0.000000e+00> : vector<8x8xf32>
    %102 = tpu.matmul %101, %85, %cst_28 {dimension_numbers = #tpu.dot_dimension_numbers<[1], [0], [0], [1], [0, 0, 1, 1], [], []>} : vector<8x8xbf16>, vector<8x8xbf16>, vector<8x8xf32> -> vector<8x8xf32>
    %c0_29 = arith.constant 0 : index
    %c16 = arith.constant 16 : index
    %103 = vector.load %arg16[%c0_29, %c16] : memref<16x32xf32, #tpu.memory_space<vmem>>, vector<8x8xf32>
    tpu.vector_store %arg16[%c0_29, %c16], %102 {strides = array<i32>} : memref<16x32xf32, #tpu.memory_space<vmem>>, vector<8x8xf32>,
    %104 = vector.extract_strided_slice %29 {offsets = [0, 24], sizes = [8, 8], strides = [1, 1]} : vector<8x32xf32> to vector<8x8xf32>
    %105 = arith.truncf %104 : vector<8x8xf32> to vector<8x8xbf16>
    %106 = vector.extract_strided_slice %30 {offsets = [0, 24], sizes = [8, 8], strides = [1, 1]} : vector<8x32xf32> to vector<8x8xf32>
    %107 = arith.truncf %106 : vector<8x8xf32> to vector<8x8xbf16>
    %108 = vector.extract_strided_slice %31 {offsets = [0, 24], sizes = [8, 8], strides = [1, 1]} : vector<8x32xf32> to vector<8x8xf32>
    %109 = arith.truncf %108 : vector<8x8xf32> to vector<8x8xbf16>
    %cst_30 = arith.constant dense<0.000000e+00> : vector<8x8xf32>
    %110 = tpu.matmul %105, %107, %cst_30 {dimension_numbers = #tpu.dot_dimension_numbers<[1], [1], [0], [0], [0, 0, 1, 0], [], []>} : vector<8x8xbf16>, vector<8x8xbf16>, vector<8x8xf32> -> vector<8x8xf32>
    %cst_31 = arith.constant -1.000000e+09 : f32
    %111 = vector.broadcast %cst_31 : f32 to vector<8x8xf32>
    %112 = arith.select %22, %110, %111 : vector<8x8xi1>, vector<8x8xf32>
    %cst_32 = arith.constant dense<0xFF800000> : vector<8xf32>
    %113 = vector.multi_reduction <maximumf>, %112, %cst_32 [1] : vector<8x8xf32> to vector<8xf32>
    %114 = vector.shape_cast %113 : vector<8xf32> to vector<8x1xf32>
    %115 = vector.broadcast %114 : vector<8x1xf32> to vector<8x8xf32>
    %116 = arith.subf %112, %115 : vector<8x8xf32>
    %117 = math.exp %116 : vector<8x8xf32>
    %cst_33 = arith.constant dense<0.000000e+00> : vector<8xf32>
    %118 = vector.multi_reduction <add>, %117, %cst_33 [1] : vector<8x8xf32> to vector<8xf32>
    %119 = vector.shape_cast %118 : vector<8xf32> to vector<8x1xf32>
    %120 = tpu.reciprocal %119 {approx = true} : vector<8x1xf32> -> vector<8x1xf32>
    %121 = vector.broadcast %120 : vector<8x1xf32> to vector<8x8xf32>
    %122 = arith.mulf %117, %121 : vector<8x8xf32>
    %cst_34 = arith.constant 0.000000e+00 : f32
    %123 = vector.broadcast %cst_34 : f32 to vector<8x8xf32>
    %124 = arith.select %22, %122, %123 : vector<8x8xi1>, vector<8x8xf32>
    %125 = arith.truncf %124 : vector<8x8xf32> to vector<8x8xbf16>
    %cst_35 = arith.constant dense<0.000000e+00> : vector<8x8xf32>
    %126 = tpu.matmul %125, %109, %cst_35 {dimension_numbers = #tpu.dot_dimension_numbers<[1], [0], [0], [1], [0, 0, 1, 1], [], []>} : vector<8x8xbf16>, vector<8x8xbf16>, vector<8x8xf32> -> vector<8x8xf32>
    %c0_36 = arith.constant 0 : index
    %c24 = arith.constant 24 : index
    %127 = vector.load %arg16[%c0_36, %c24] : memref<16x32xf32, #tpu.memory_space<vmem>>, vector<8x8xf32>
    tpu.vector_store %arg16[%c0_36, %c24], %126 {strides = array<i32>} : memref<16x32xf32, #tpu.memory_space<vmem>>, vector<8x8xf32>,
    %c1_i32 = arith.constant 1 : i32
    %128 = arith.addi %0, %c1_i32 : i32
    %129 = arith.index_cast %128 : i32 to index
    %130 = memref.load %arg1[%129] : memref<2xi32, #tpu.memory_space<smem>>
    %131 = vector.broadcast %130 : i32 to vector<8x8xi32>
    %132 = arith.cmpi slt, %12, %131 : vector<8x8xi32>
    %133 = vector.broadcast %130 : i32 to vector<8x8xi32>
    %134 = arith.cmpi slt, %13, %133 : vector<8x8xi32>
    %135 = arith.andi %132, %134 : vector<8x8xi1>
    %c8_i32 = arith.constant 8 : i32
    %136 = vector.broadcast %c8_i32 : i32 to vector<16x32xi32>
    %137 = arith.cmpi sge, %14, %136 : vector<16x32xi32>
    %c8_i32_37 = arith.constant 8 : i32
    %138 = arith.addi %c8_i32_37, %130 : i32
    %139 = vector.broadcast %138 : i32 to vector<16x32xi32>
    %140 = arith.cmpi slt, %14, %139 : vector<16x32xi32>
    %141 = arith.andi %137, %140 : vector<16x32xi1>
    %142 = arith.ori %28, %141 : vector<16x32xi1>
    %143 = vector.extract_strided_slice %11 {offsets = [8, 0], sizes = [8, 32], strides = [1, 1]} : vector<16x32xf32> to vector<8x32xf32>
    %144 = vector.extract_strided_slice %8 {offsets = [8, 0], sizes = [8, 32], strides = [1, 1]} : vector<16x32xf32> to vector<8x32xf32>
    %145 = vector.extract_strided_slice %9 {offsets = [8, 0], sizes = [8, 32], strides = [1, 1]} : vector<16x32xf32> to vector<8x32xf32>
    %146 = vector.extract_strided_slice %143 {offsets = [0, 0], sizes = [8, 8], strides = [1, 1]} : vector<8x32xf32> to vector<8x8xf32>
    %147 = arith.truncf %146 : vector<8x8xf32> to vector<8x8xbf16>
    %148 = vector.extract_strided_slice %144 {offsets = [0, 0], sizes = [8, 8], strides = [1, 1]} : vector<8x32xf32> to vector<8x8xf32>
    %149 = arith.truncf %148 : vector<8x8xf32> to vector<8x8xbf16>
    %150 = vector.extract_strided_slice %145 {offsets = [0, 0], sizes = [8, 8], strides = [1, 1]} : vector<8x32xf32> to vector<8x8xf32>
    %151 = arith.truncf %150 : vector<8x8xf32> to vector<8x8xbf16>
    %cst_38 = arith.constant dense<0.000000e+00> : vector<8x8xf32>
    %152 = tpu.matmul %147, %149, %cst_38 {dimension_numbers = #tpu.dot_dimension_numbers<[1], [1], [0], [0], [0, 0, 1, 0], [], []>} : vector<8x8xbf16>, vector<8x8xbf16>, vector<8x8xf32> -> vector<8x8xf32>
    %cst_39 = arith.constant -1.000000e+09 : f32
    %153 = vector.broadcast %cst_39 : f32 to vector<8x8xf32>
    %154 = arith.select %135, %152, %153 : vector<8x8xi1>, vector<8x8xf32>
    %cst_40 = arith.constant dense<0xFF800000> : vector<8xf32>
    %155 = vector.multi_reduction <maximumf>, %154, %cst_40 [1] : vector<8x8xf32> to vector<8xf32>
    %156 = vector.shape_cast %155 : vector<8xf32> to vector<8x1xf32>
    %157 = vector.broadcast %156 : vector<8x1xf32> to vector<8x8xf32>
    %158 = arith.subf %154, %157 : vector<8x8xf32>
    %159 = math.exp %158 : vector<8x8xf32>
    %cst_41 = arith.constant dense<0.000000e+00> : vector<8xf32>
    %160 = vector.multi_reduction <add>, %159, %cst_41 [1] : vector<8x8xf32> to vector<8xf32>
    %161 = vector.shape_cast %160 : vector<8xf32> to vector<8x1xf32>
    %162 = tpu.reciprocal %161 {approx = true} : vector<8x1xf32> -> vector<8x1xf32>
    %163 = vector.broadcast %162 : vector<8x1xf32> to vector<8x8xf32>
    %164 = arith.mulf %159, %163 : vector<8x8xf32>
    %cst_42 = arith.constant 0.000000e+00 : f32
    %165 = vector.broadcast %cst_42 : f32 to vector<8x8xf32>
    %166 = arith.select %135, %164, %165 : vector<8x8xi1>, vector<8x8xf32>
    %167 = arith.truncf %166 : vector<8x8xf32> to vector<8x8xbf16>
    %cst_43 = arith.constant dense<0.000000e+00> : vector<8x8xf32>
    %168 = tpu.matmul %167, %151, %cst_43 {dimension_numbers = #tpu.dot_dimension_numbers<[1], [0], [0], [1], [0, 0, 1, 1], [], []>} : vector<8x8xbf16>, vector<8x8xbf16>, vector<8x8xf32> -> vector<8x8xf32>
    %c8_44 = arith.constant 8 : index
    %c0_45 = arith.constant 0 : index
    %169 = vector.load %arg16[%c8_44, %c0_45] : memref<16x32xf32, #tpu.memory_space<vmem>>, vector<8x8xf32>
    tpu.vector_store %arg16[%c8_44, %c0_45], %168 {strides = array<i32>} : memref<16x32xf32, #tpu.memory_space<vmem>>, vector<8x8xf32>,
    %170 = vector.extract_strided_slice %143 {offsets = [0, 8], sizes = [8, 8], strides = [1, 1]} : vector<8x32xf32> to vector<8x8xf32>
    %171 = arith.truncf %170 : vector<8x8xf32> to vector<8x8xbf16>
    %172 = vector.extract_strided_slice %144 {offsets = [0, 8], sizes = [8, 8], strides = [1, 1]} : vector<8x32xf32> to vector<8x8xf32>
    %173 = arith.truncf %172 : vector<8x8xf32> to vector<8x8xbf16>
    %174 = vector.extract_strided_slice %145 {offsets = [0, 8], sizes = [8, 8], strides = [1, 1]} : vector<8x32xf32> to vector<8x8xf32>
    %175 = arith.truncf %174 : vector<8x8xf32> to vector<8x8xbf16>
    %cst_46 = arith.constant dense<0.000000e+00> : vector<8x8xf32>
    %176 = tpu.matmul %171, %173, %cst_46 {dimension_numbers = #tpu.dot_dimension_numbers<[1], [1], [0], [0], [0, 0, 1, 0], [], []>} : vector<8x8xbf16>, vector<8x8xbf16>, vector<8x8xf32> -> vector<8x8xf32>
    %cst_47 = arith.constant -1.000000e+09 : f32
    %177 = vector.broadcast %cst_47 : f32 to vector<8x8xf32>
    %178 = arith.select %135, %176, %177 : vector<8x8xi1>, vector<8x8xf32>
    %cst_48 = arith.constant dense<0xFF800000> : vector<8xf32>
    %179 = vector.multi_reduction <maximumf>, %178, %cst_48 [1] : vector<8x8xf32> to vector<8xf32>
    %180 = vector.shape_cast %179 : vector<8xf32> to vector<8x1xf32>
    %181 = vector.broadcast %180 : vector<8x1xf32> to vector<8x8xf32>
    %182 = arith.subf %178, %181 : vector<8x8xf32>
    %183 = math.exp %182 : vector<8x8xf32>
    %cst_49 = arith.constant dense<0.000000e+00> : vector<8xf32>
    %184 = vector.multi_reduction <add>, %183, %cst_49 [1] : vector<8x8xf32> to vector<8xf32>
    %185 = vector.shape_cast %184 : vector<8xf32> to vector<8x1xf32>
    %186 = tpu.reciprocal %185 {approx = true} : vector<8x1xf32> -> vector<8x1xf32>
    %187 = vector.broadcast %186 : vector<8x1xf32> to vector<8x8xf32>
    %188 = arith.mulf %183, %187 : vector<8x8xf32>
    %cst_50 = arith.constant 0.000000e+00 : f32
    %189 = vector.broadcast %cst_50 : f32 to vector<8x8xf32>
    %190 = arith.select %135, %188, %189 : vector<8x8xi1>, vector<8x8xf32>
    %191 = arith.truncf %190 : vector<8x8xf32> to vector<8x8xbf16>
    %cst_51 = arith.constant dense<0.000000e+00> : vector<8x8xf32>
    %192 = tpu.matmul %191, %175, %cst_51 {dimension_numbers = #tpu.dot_dimension_numbers<[1], [0], [0], [1], [0, 0, 1, 1], [], []>} : vector<8x8xbf16>, vector<8x8xbf16>, vector<8x8xf32> -> vector<8x8xf32>
    %c8_52 = arith.constant 8 : index
    %c8_53 = arith.constant 8 : index
    %193 = vector.load %arg16[%c8_52, %c8_53] : memref<16x32xf32, #tpu.memory_space<vmem>>, vector<8x8xf32>
    tpu.vector_store %arg16[%c8_52, %c8_53], %192 {strides = array<i32>} : memref<16x32xf32, #tpu.memory_space<vmem>>, vector<8x8xf32>,
    %194 = vector.extract_strided_slice %143 {offsets = [0, 16], sizes = [8, 8], strides = [1, 1]} : vector<8x32xf32> to vector<8x8xf32>
    %195 = arith.truncf %194 : vector<8x8xf32> to vector<8x8xbf16>
    %196 = vector.extract_strided_slice %144 {offsets = [0, 16], sizes = [8, 8], strides = [1, 1]} : vector<8x32xf32> to vector<8x8xf32>
    %197 = arith.truncf %196 : vector<8x8xf32> to vector<8x8xbf16>
    %198 = vector.extract_strided_slice %145 {offsets = [0, 16], sizes = [8, 8], strides = [1, 1]} : vector<8x32xf32> to vector<8x8xf32>
    %199 = arith.truncf %198 : vector<8x8xf32> to vector<8x8xbf16>
    %cst_54 = arith.constant dense<0.000000e+00> : vector<8x8xf32>
    %200 = tpu.matmul %195, %197, %cst_54 {dimension_numbers = #tpu.dot_dimension_numbers<[1], [1], [0], [0], [0, 0, 1, 0], [], []>} : vector<8x8xbf16>, vector<8x8xbf16>, vector<8x8xf32> -> vector<8x8xf32>
    %cst_55 = arith.constant -1.000000e+09 : f32
    %201 = vector.broadcast %cst_55 : f32 to vector<8x8xf32>
    %202 = arith.select %135, %200, %201 : vector<8x8xi1>, vector<8x8xf32>
    %cst_56 = arith.constant dense<0xFF800000> : vector<8xf32>
    %203 = vector.multi_reduction <maximumf>, %202, %cst_56 [1] : vector<8x8xf32> to vector<8xf32>
    %204 = vector.shape_cast %203 : vector<8xf32> to vector<8x1xf32>
    %205 = vector.broadcast %204 : vector<8x1xf32> to vector<8x8xf32>
    %206 = arith.subf %202, %205 : vector<8x8xf32>
    %207 = math.exp %206 : vector<8x8xf32>
    %cst_57 = arith.constant dense<0.000000e+00> : vector<8xf32>
    %208 = vector.multi_reduction <add>, %207, %cst_57 [1] : vector<8x8xf32> to vector<8xf32>
    %209 = vector.shape_cast %208 : vector<8xf32> to vector<8x1xf32>
    %210 = tpu.reciprocal %209 {approx = true} : vector<8x1xf32> -> vector<8x1xf32>
    %211 = vector.broadcast %210 : vector<8x1xf32> to vector<8x8xf32>
    %212 = arith.mulf %207, %211 : vector<8x8xf32>
    %cst_58 = arith.constant 0.000000e+00 : f32
    %213 = vector.broadcast %cst_58 : f32 to vector<8x8xf32>
    %214 = arith.select %135, %212, %213 : vector<8x8xi1>, vector<8x8xf32>
    %215 = arith.truncf %214 : vector<8x8xf32> to vector<8x8xbf16>
    %cst_59 = arith.constant dense<0.000000e+00> : vector<8x8xf32>
    %216 = tpu.matmul %215, %199, %cst_59 {dimension_numbers = #tpu.dot_dimension_numbers<[1], [0], [0], [1], [0, 0, 1, 1], [], []>} : vector<8x8xbf16>, vector<8x8xbf16>, vector<8x8xf32> -> vector<8x8xf32>
    %c8_60 = arith.constant 8 : index
    %c16_61 = arith.constant 16 : index
    %217 = vector.load %arg16[%c8_60, %c16_61] : memref<16x32xf32, #tpu.memory_space<vmem>>, vector<8x8xf32>
    tpu.vector_store %arg16[%c8_60, %c16_61], %216 {strides = array<i32>} : memref<16x32xf32, #tpu.memory_space<vmem>>, vector<8x8xf32>,
    %218 = vector.extract_strided_slice %143 {offsets = [0, 24], sizes = [8, 8], strides = [1, 1]} : vector<8x32xf32> to vector<8x8xf32>
    %219 = arith.truncf %218 : vector<8x8xf32> to vector<8x8xbf16>
    %220 = vector.extract_strided_slice %144 {offsets = [0, 24], sizes = [8, 8], strides = [1, 1]} : vector<8x32xf32> to vector<8x8xf32>
    %221 = arith.truncf %220 : vector<8x8xf32> to vector<8x8xbf16>
    %222 = vector.extract_strided_slice %145 {offsets = [0, 24], sizes = [8, 8], strides = [1, 1]} : vector<8x32xf32> to vector<8x8xf32>
    %223 = arith.truncf %222 : vector<8x8xf32> to vector<8x8xbf16>
    %cst_62 = arith.constant dense<0.000000e+00> : vector<8x8xf32>
    %224 = tpu.matmul %219, %221, %cst_62 {dimension_numbers = #tpu.dot_dimension_numbers<[1], [1], [0], [0], [0, 0, 1, 0], [], []>} : vector<8x8xbf16>, vector<8x8xbf16>, vector<8x8xf32> -> vector<8x8xf32>
    %cst_63 = arith.constant -1.000000e+09 : f32
    %225 = vector.broadcast %cst_63 : f32 to vector<8x8xf32>
    %226 = arith.select %135, %224, %225 : vector<8x8xi1>, vector<8x8xf32>
    %cst_64 = arith.constant dense<0xFF800000> : vector<8xf32>
    %227 = vector.multi_reduction <maximumf>, %226, %cst_64 [1] : vector<8x8xf32> to vector<8xf32>
    %228 = vector.shape_cast %227 : vector<8xf32> to vector<8x1xf32>
    %229 = vector.broadcast %228 : vector<8x1xf32> to vector<8x8xf32>
    %230 = arith.subf %226, %229 : vector<8x8xf32>
    %231 = math.exp %230 : vector<8x8xf32>
    %cst_65 = arith.constant dense<0.000000e+00> : vector<8xf32>
    %232 = vector.multi_reduction <add>, %231, %cst_65 [1] : vector<8x8xf32> to vector<8xf32>
    %233 = vector.shape_cast %232 : vector<8xf32> to vector<8x1xf32>
    %234 = tpu.reciprocal %233 {approx = true} : vector<8x1xf32> -> vector<8x1xf32>
    %235 = vector.broadcast %234 : vector<8x1xf32> to vector<8x8xf32>
    %236 = arith.mulf %231, %235 : vector<8x8xf32>
    %cst_66 = arith.constant 0.000000e+00 : f32
    %237 = vector.broadcast %cst_66 : f32 to vector<8x8xf32>
    %238 = arith.select %135, %236, %237 : vector<8x8xi1>, vector<8x8xf32>
    %239 = arith.truncf %238 : vector<8x8xf32> to vector<8x8xbf16>
    %cst_67 = arith.constant dense<0.000000e+00> : vector<8x8xf32>
    %240 = tpu.matmul %239, %223, %cst_67 {dimension_numbers = #tpu.dot_dimension_numbers<[1], [0], [0], [1], [0, 0, 1, 1], [], []>} : vector<8x8xbf16>, vector<8x8xbf16>, vector<8x8xf32> -> vector<8x8xf32>
    %c8_68 = arith.constant 8 : index
    %c24_69 = arith.constant 24 : index
    %241 = vector.load %arg16[%c8_68, %c24_69] : memref<16x32xf32, #tpu.memory_space<vmem>>, vector<8x8xf32>
    tpu.vector_store %arg16[%c8_68, %c24_69], %240 {strides = array<i32>} : memref<16x32xf32, #tpu.memory_space<vmem>>, vector<8x8xf32>,
    %c0_70 = arith.constant 0 : index
    %c0_71 = arith.constant 0 : index
    %242 = vector.load %arg16[%c0_70, %c0_71] : memref<16x32xf32, #tpu.memory_space<vmem>>, vector<16x32xf32>
    %243 = arith.truncf %242 : vector<16x32xf32> to vector<16x32xbf16>
    %c0_72 = arith.constant 0 : index
    %c0_73 = arith.constant 0 : index
    %244 = vector.load %arg5[%c0_72, %c0_73] : memref<32x32xbf16, #tpu.memory_space<vmem>>, vector<32x32xbf16>
    %cst_74 = arith.constant dense<0.000000e+00> : vector<16x32xf32>
    %245 = tpu.matmul %243, %244, %cst_74 {dimension_numbers = #tpu.dot_dimension_numbers<[1], [0], [0], [1], [0, 0, 1, 1], [], []>} : vector<16x32xbf16>, vector<32x32xbf16>, vector<16x32xf32> -> vector<16x32xf32>
    %c0_75 = arith.constant 0 : index
    %c0_76 = arith.constant 0 : index
    %246 = vector.load %arg6[%c0_75, %c0_76] : memref<1x32xf32, #tpu.memory_space<vmem>>, vector<1x32xf32>
    %247 = vector.broadcast %246 : vector<1x32xf32> to vector<16x32xf32>
    %248 = arith.addf %245, %247 : vector<16x32xf32>
    %249 = arith.extf %1 : vector<16x32xbf16> to vector<16x32xf32>
    %250 = arith.addf %249, %248 : vector<16x32xf32>
    %c0_77 = arith.constant 0 : index
    %c0_78 = arith.constant 0 : index
    %251 = vector.load %arg7[%c0_77, %c0_78] : memref<1x32xf32, #tpu.memory_space<vmem>>, vector<1x32xf32>
    %c0_79 = arith.constant 0 : index
    %c0_80 = arith.constant 0 : index
    %252 = vector.load %arg8[%c0_79, %c0_80] : memref<1x32xf32, #tpu.memory_space<vmem>>, vector<1x32xf32>
    %cst_81 = arith.constant dense<0.000000e+00> : vector<16xf32>
    %253 = vector.multi_reduction <add>, %250, %cst_81 [1] : vector<16x32xf32> to vector<16xf32>
    %254 = vector.shape_cast %253 : vector<16xf32> to vector<16x1xf32>
    %cst_82 = arith.constant 3.200000e+01 : f32
    %255 = vector.broadcast %cst_82 : f32 to vector<16x1xf32>
    %256 = arith.divf %254, %255 : vector<16x1xf32>
    %257 = vector.broadcast %256 : vector<16x1xf32> to vector<16x32xf32>
    %258 = arith.subf %250, %257 : vector<16x32xf32>
    %259 = arith.mulf %258, %258 : vector<16x32xf32>
    %cst_83 = arith.constant dense<0.000000e+00> : vector<16xf32>
    %260 = vector.multi_reduction <add>, %259, %cst_83 [1] : vector<16x32xf32> to vector<16xf32>
    %261 = vector.shape_cast %260 : vector<16xf32> to vector<16x1xf32>
    %cst_84 = arith.constant 3.200000e+01 : f32
    %262 = vector.broadcast %cst_84 : f32 to vector<16x1xf32>
    %263 = arith.divf %261, %262 : vector<16x1xf32>
    %264 = vector.broadcast %256 : vector<16x1xf32> to vector<16x32xf32>
    %265 = arith.subf %250, %264 : vector<16x32xf32>
    %cst_85 = arith.constant 9.99999974E-6 : f32
    %266 = vector.broadcast %cst_85 : f32 to vector<16x1xf32>
    %267 = arith.addf %263, %266 : vector<16x1xf32>
    %268 = math.rsqrt %267 : vector<16x1xf32>
    %269 = vector.broadcast %268 : vector<16x1xf32> to vector<16x32xf32>
    %270 = arith.mulf %265, %269 : vector<16x32xf32>
    %271 = vector.broadcast %251 : vector<1x32xf32> to vector<16x32xf32>
    %272 = arith.mulf %270, %271 : vector<16x32xf32>
    %273 = vector.broadcast %252 : vector<1x32xf32> to vector<16x32xf32>
    %274 = arith.addf %272, %273 : vector<16x32xf32>
    %cst_86 = arith.constant 0.000000e+00 : f32
    %275 = vector.broadcast %cst_86 : f32 to vector<16x32xf32>
    %276 = arith.select %142, %274, %275 : vector<16x32xi1>, vector<16x32xf32>
    %277 = arith.truncf %276 : vector<16x32xf32> to vector<16x32xbf16>
    %c0_87 = arith.constant 0 : index
    %c0_88 = arith.constant 0 : index
    %278 = vector.load %arg9[%c0_87, %c0_88] : memref<32x128xbf16, #tpu.memory_space<vmem>>, vector<32x128xbf16>
    %cst_89 = arith.constant dense<0.000000e+00> : vector<16x128xf32>
    %279 = tpu.matmul %277, %278, %cst_89 {dimension_numbers = #tpu.dot_dimension_numbers<[1], [0], [0], [1], [0, 0, 1, 1], [], []>} : vector<16x32xbf16>, vector<32x128xbf16>, vector<16x128xf32> -> vector<16x128xf32>
    %c0_90 = arith.constant 0 : index
    %c0_91 = arith.constant 0 : index
    %280 = vector.load %arg10[%c0_90, %c0_91] : memref<1x128xf32, #tpu.memory_space<vmem>>, vector<1x128xf32>
    %281 = vector.broadcast %280 : vector<1x128xf32> to vector<16x128xf32>
    %282 = arith.addf %279, %281 : vector<16x128xf32>
    %cst_92 = arith.constant 5.000000e-01 : f32
    %283 = vector.broadcast %cst_92 : f32 to vector<16x128xf32>
    %284 = arith.mulf %283, %282 : vector<16x128xf32>
    %cst_93 = arith.constant 4.471500e-02 : f32
    %285 = vector.broadcast %cst_93 : f32 to vector<16x128xf32>
    %286 = arith.mulf %285, %282 : vector<16x128xf32>
    %287 = arith.mulf %286, %282 : vector<16x128xf32>
    %288 = arith.mulf %287, %282 : vector<16x128xf32>
    %289 = arith.addf %282, %288 : vector<16x128xf32>
    %cst_94 = arith.constant 0.797884583 : f32
    %290 = vector.broadcast %cst_94 : f32 to vector<16x128xf32>
    %291 = arith.mulf %290, %289 : vector<16x128xf32>
    %292 = math.tanh %291 : vector<16x128xf32>
    %cst_95 = arith.constant 1.000000e+00 : f32
    %293 = vector.broadcast %cst_95 : f32 to vector<16x128xf32>
    %294 = arith.addf %293, %292 : vector<16x128xf32>
    %295 = arith.mulf %284, %294 : vector<16x128xf32>
    %296 = arith.truncf %295 : vector<16x128xf32> to vector<16x128xbf16>
    %c0_96 = arith.constant 0 : index
    %c0_97 = arith.constant 0 : index
    %297 = vector.load %arg11[%c0_96, %c0_97] : memref<128x32xbf16, #tpu.memory_space<vmem>>, vector<128x32xbf16>
    %cst_98 = arith.constant dense<0.000000e+00> : vector<16x32xf32>
    %298 = tpu.matmul %296, %297, %cst_98 {dimension_numbers = #tpu.dot_dimension_numbers<[1], [0], [0], [1], [0, 0, 1, 1], [], []>} : vector<16x128xbf16>, vector<128x32xbf16>, vector<16x32xf32> -> vector<16x32xf32>
    %c0_99 = arith.constant 0 : index
    %c0_100 = arith.constant 0 : index
    %299 = vector.load %arg12[%c0_99, %c0_100] : memref<1x32xf32, #tpu.memory_space<vmem>>, vector<1x32xf32>
    %300 = vector.broadcast %299 : vector<1x32xf32> to vector<16x32xf32>
    %301 = arith.addf %298, %300 : vector<16x32xf32>
    %302 = arith.addf %276, %301 : vector<16x32xf32>
    %c0_101 = arith.constant 0 : index
    %c0_102 = arith.constant 0 : index
    %303 = vector.load %arg13[%c0_101, %c0_102] : memref<1x32xf32, #tpu.memory_space<vmem>>, vector<1x32xf32>
    %c0_103 = arith.constant 0 : index
    %c0_104 = arith.constant 0 : index
    %304 = vector.load %arg14[%c0_103, %c0_104] : memref<1x32xf32, #tpu.memory_space<vmem>>, vector<1x32xf32>
    %cst_105 = arith.constant dense<0.000000e+00> : vector<16xf32>
    %305 = vector.multi_reduction <add>, %302, %cst_105 [1] : vector<16x32xf32> to vector<16xf32>
    %306 = vector.shape_cast %305 : vector<16xf32> to vector<16x1xf32>
    %cst_106 = arith.constant 3.200000e+01 : f32
    %307 = vector.broadcast %cst_106 : f32 to vector<16x1xf32>
    %308 = arith.divf %306, %307 : vector<16x1xf32>
    %309 = vector.broadcast %308 : vector<16x1xf32> to vector<16x32xf32>
    %310 = arith.subf %302, %309 : vector<16x32xf32>
    %311 = arith.mulf %310, %310 : vector<16x32xf32>
    %cst_107 = arith.constant dense<0.000000e+00> : vector<16xf32>
    %312 = vector.multi_reduction <add>, %311, %cst_107 [1] : vector<16x32xf32> to vector<16xf32>
    %313 = vector.shape_cast %312 : vector<16xf32> to vector<16x1xf32>
    %cst_108 = arith.constant 3.200000e+01 : f32
    %314 = vector.broadcast %cst_108 : f32 to vector<16x1xf32>
    %315 = arith.divf %313, %314 : vector<16x1xf32>
    %316 = vector.broadcast %308 : vector<16x1xf32> to vector<16x32xf32>
    %317 = arith.subf %302, %316 : vector<16x32xf32>
    %cst_109 = arith.constant 9.99999974E-6 : f32
    %318 = vector.broadcast %cst_109 : f32 to vector<16x1xf32>
    %319 = arith.addf %315, %318 : vector<16x1xf32>
    %320 = math.rsqrt %319 : vector<16x1xf32>
    %321 = vector.broadcast %320 : vector<16x1xf32> to vector<16x32xf32>
    %322 = arith.mulf %317, %321 : vector<16x32xf32>
    %323 = vector.broadcast %303 : vector<1x32xf32> to vector<16x32xf32>
    %324 = arith.mulf %322, %323 : vector<16x32xf32>
    %325 = vector.broadcast %304 : vector<1x32xf32> to vector<16x32xf32>
    %326 = arith.addf %324, %325 : vector<16x32xf32>
    %cst_110 = arith.constant 0.000000e+00 : f32
    %327 = vector.broadcast %cst_110 : f32 to vector<16x32xf32>
    %328 = arith.select %142, %326, %327 : vector<16x32xi1>, vector<16x32xf32>
    %c0_111 = arith.constant 0 : index
    %c0_112 = arith.constant 0 : index
    %329 = vector.load %arg15[%c0_111, %c0_112] : memref<16x32xf32, #tpu.memory_space<vmem>>, vector<16x32xf32>
    tpu.vector_store %arg15[%c0_111, %c0_112], %328 {strides = array<i32>} : memref<16x32xf32, #tpu.memory_space<vmem>>, vector<16x32xf32>,
    return
  }
  func.func @transform_0(%arg0: i32, %arg1: memref<2xi32, #tpu.memory_space<smem>>) -> (i32, i32) {
    %c0_i32 = arith.constant 0 : i32
    %c0_i32_0 = arith.constant 0 : i32
    return %arg0, %c0_i32 : i32, i32
  }
  func.func @transform_1(%arg0: i32, %arg1: memref<2xi32, #tpu.memory_space<smem>>) -> (i32, i32) {
    %c0_i32 = arith.constant 0 : i32
    %c0_i32_0 = arith.constant 0 : i32
    %c0_i32_1 = arith.constant 0 : i32
    return %c0_i32, %c0_i32_0 : i32, i32
  }
  func.func @transform_2(%arg0: i32, %arg1: memref<2xi32, #tpu.memory_space<smem>>) -> (i32, i32) {
    %c0_i32 = arith.constant 0 : i32
    %c0_i32_0 = arith.constant 0 : i32
    %c0_i32_1 = arith.constant 0 : i32
    return %c0_i32, %c0_i32_0 : i32, i32
  }
  func.func @transform_3(%arg0: i32, %arg1: memref<2xi32, #tpu.memory_space<smem>>) -> (i32, i32) {
    %c0_i32 = arith.constant 0 : i32
    %c0_i32_0 = arith.constant 0 : i32
    %c0_i32_1 = arith.constant 0 : i32
    return %c0_i32, %c0_i32_0 : i32, i32
  }
  func.func @transform_4(%arg0: i32, %arg1: memref<2xi32, #tpu.memory_space<smem>>) -> (i32, i32) {
    %c0_i32 = arith.constant 0 : i32
    %c0_i32_0 = arith.constant 0 : i32
    %c0_i32_1 = arith.constant 0 : i32
    return %c0_i32, %c0_i32_0 : i32, i32
  }
  func.func @transform_5(%arg0: i32, %arg1: memref<2xi32, #tpu.memory_space<smem>>) -> (i32, i32) {
    %c0_i32 = arith.constant 0 : i32
    %c0_i32_0 = arith.constant 0 : i32
    %c0_i32_1 = arith.constant 0 : i32
    return %c0_i32, %c0_i32_0 : i32, i32
  }
  func.func @transform_6(%arg0: i32, %arg1: memref<2xi32, #tpu.memory_space<smem>>) -> (i32, i32) {
    %c0_i32 = arith.constant 0 : i32
    %c0_i32_0 = arith.constant 0 : i32
    %c0_i32_1 = arith.constant 0 : i32
    return %c0_i32, %c0_i32_0 : i32, i32
  }
  func.func @transform_7(%arg0: i32, %arg1: memref<2xi32, #tpu.memory_space<smem>>) -> (i32, i32) {
    %c0_i32 = arith.constant 0 : i32
    %c0_i32_0 = arith.constant 0 : i32
    %c0_i32_1 = arith.constant 0 : i32
    return %c0_i32, %c0_i32_0 : i32, i32
  }
  func.func @transform_8(%arg0: i32, %arg1: memref<2xi32, #tpu.memory_space<smem>>) -> (i32, i32) {
    %c0_i32 = arith.constant 0 : i32
    %c0_i32_0 = arith.constant 0 : i32
    %c0_i32_1 = arith.constant 0 : i32
    return %c0_i32, %c0_i32_0 : i32, i32
  }
  func.func @transform_9(%arg0: i32, %arg1: memref<2xi32, #tpu.memory_space<smem>>) -> (i32, i32) {
    %c0_i32 = arith.constant 0 : i32
    %c0_i32_0 = arith.constant 0 : i32
    %c0_i32_1 = arith.constant 0 : i32
    return %c0_i32, %c0_i32_0 : i32, i32
  }
  func.func @transform_10(%arg0: i32, %arg1: memref<2xi32, #tpu.memory_space<smem>>) -> (i32, i32) {
    %c0_i32 = arith.constant 0 : i32
    %c0_i32_0 = arith.constant 0 : i32
    %c0_i32_1 = arith.constant 0 : i32
    return %c0_i32, %c0_i32_0 : i32, i32
  }
  func.func @transform_11(%arg0: i32, %arg1: memref<2xi32, #tpu.memory_space<smem>>) -> (i32, i32) {
    %c0_i32 = arith.constant 0 : i32
    %c0_i32_0 = arith.constant 0 : i32
    %c0_i32_1 = arith.constant 0 : i32
    return %c0_i32, %c0_i32_0 : i32, i32
  }
  func.func @transform_12(%arg0: i32, %arg1: memref<2xi32, #tpu.memory_space<smem>>) -> (i32, i32) {
    %c0_i32 = arith.constant 0 : i32
    %c0_i32_0 = arith.constant 0 : i32
    %c0_i32_1 = arith.constant 0 : i32
    return %c0_i32, %c0_i32_0 : i32, i32
  }
  func.func @transform_13(%arg0: i32, %arg1: memref<2xi32, #tpu.memory_space<smem>>) -> (i32, i32) {
    %c0_i32 = arith.constant 0 : i32
    %c0_i32_0 = arith.constant 0 : i32
    return %arg0, %c0_i32 : i32, i32
  }
}

</mosaic_0001>

<llo_original>
// kernel: tpu_custom_call.1
$region0: #{tpu_custom_call.1}
  #allocation0 [shape = 'u32[]', space=smem, size = 0x4, offset = 0x4, fixed_abs, tag = 'smem constant byte address 0x4 - core index']
  #allocation1 [shape = 'u32[144,128]{1,0:T(1,128)}', space=vmem, size = 0x12000, scoped, tag = 'internal scratch']
  #allocation2 [shape = 'f32[16,32]{1,0:T(8,128)}', space=vmem, size = 0x2000, scoped, tag = 'scratch operand']
  #allocation3 [shape = 's32[1]{0}', space=sflag, size = 0x4, scoped, tag = 'scoped memory for tpu_custom_call.1']
  #allocation4 [shape = 'u8[512]{0}', space=smem, size = 0x200, scoped, tag = 'prefetched SMEM operand 0']
  %s0 = inlined_call_operand.vmem [shape: s32[2], index: 0, kind: input, shape index: {}]
  %s1 = inlined_call_operand.vmem [shape: bf16[16,32], index: 1, kind: input, shape index: {}]
  %s2 = inlined_call_operand.vmem [shape: bf16[32,96], index: 2, kind: input, shape index: {}]
  %s3 = inlined_call_operand.vmem [shape: f32[1,96], index: 3, kind: input, shape index: {}]
  %s4 = inlined_call_operand.vmem [shape: bf16[32,32], index: 4, kind: input, shape index: {}]
  %s5 = inlined_call_operand.vmem [shape: f32[1,32], index: 5, kind: input, shape index: {}]
  %s6 = inlined_call_operand.vmem [shape: f32[1,32], index: 6, kind: input, shape index: {}]
  %s7 = inlined_call_operand.vmem [shape: f32[1,32], index: 7, kind: input, shape index: {}]
  %s8 = inlined_call_operand.vmem [shape: bf16[32,128], index: 8, kind: input, shape index: {}]
  %s9 = inlined_call_operand.vmem [shape: f32[1,128], index: 9, kind: input, shape index: {}]
  %s10 = inlined_call_operand.vmem [shape: bf16[128,32], index: 10, kind: input, shape index: {}]
  %s11 = inlined_call_operand.vmem [shape: f32[1,32], index: 11, kind: input, shape index: {}]
  %s12 = inlined_call_operand.vmem [shape: f32[1,32], index: 12, kind: input, shape index: {}]
  %s13 = inlined_call_operand.vmem [shape: f32[1,32], index: 13, kind: input, shape index: {}]
  %s14 = inlined_call_operand.hbm [shape: f32[16,32], index: 14, kind: output, shape index: {}]
  %s15 = sld [smem:[#allocation0]]
  $region62: #{tpu_custom_call.1} parent=0
    _
  %s17 = ssub.s32 1, %s15
  %s18 = scalar_select 0, %s17, %s15
  %s19 = sshll.u32 %s0, 4
  %s20 = int_to_ptr.vmem [resolvable:$true] %s19
  %22 = dma.vmem_to_smem %s20, 16, [#allocation4], [#allocation3]
  %23 = dma.done [#allocation3], 16
  %24 = sfence
  $region1: #{tpu_custom_call.1} parent=0
    #allocation5 [shape = 'u8[8192]{0}', space=vmem, size = 0x2000, scoped, tag = 'output window, operand 0, single buffered']
    #allocation6 [shape = 's32[1]{0}', space=sflag, size = 0x4, scoped, tag = 'scoped memory for tpu_custom_call.1']
    %25 = vsyncpa [#allocation6], 0
    // Predicated region
    $region2: #{tpu_custom_call.1} parent=1 // pred_check
      _
    $region3: #{tpu_custom_call.1} parent=1 // pred_check_branch
      %27 = sbr.rel (0) target = $region5
    $region4: #{tpu_custom_call.1} parent=1 // pred_region
      _
    $region5: #{tpu_custom_call.1} parent=1 // pred_fallthru
      _
    // Predicated region
    $region6: #{tpu_custom_call.1} parent=1 // pred_check
      _
    $region7: #{tpu_custom_call.1} parent=1 // pred_check_branch
      %29 = sbr.rel (0) target = $region9
    $region8: #{tpu_custom_call.1} parent=1 // pred_region
      _
    $region9: #{tpu_custom_call.1} parent=1 // pred_fallthru
      _
    // Predicated region
    $region10: #{tpu_custom_call.1} parent=1 // pred_check
      _
    $region11: #{tpu_custom_call.1} parent=1 // pred_check_branch
      %31 = sbr.rel (0) target = $region13
    $region12: #{tpu_custom_call.1} parent=1 // pred_region
      _
    $region13: #{tpu_custom_call.1} parent=1 // pred_fallthru
      _
    // Predicated region
    $region14: #{tpu_custom_call.1} parent=1 // pred_check
      _
    $region15: #{tpu_custom_call.1} parent=1 // pred_check_branch
      %33 = sbr.rel (0) target = $region17
    $region16: #{tpu_custom_call.1} parent=1 // pred_region
      _
    $region17: #{tpu_custom_call.1} parent=1 // pred_fallthru
      _
    // Predicated region
    $region18: #{tpu_custom_call.1} parent=1 // pred_check
      _
    $region19: #{tpu_custom_call.1} parent=1 // pred_check_branch
      %35 = sbr.rel (0) target = $region21
    $region20: #{tpu_custom_call.1} parent=1 // pred_region
      _
    $region21: #{tpu_custom_call.1} parent=1 // pred_fallthru
      _
    // Predicated region
    $region22: #{tpu_custom_call.1} parent=1 // pred_check
      _
    $region23: #{tpu_custom_call.1} parent=1 // pred_check_branch
      %37 = sbr.rel (0) target = $region25
    $region24: #{tpu_custom_call.1} parent=1 // pred_region
      _
    $region25: #{tpu_custom_call.1} parent=1 // pred_fallthru
      _
    // Predicated region
    $region26: #{tpu_custom_call.1} parent=1 // pred_check
      _
    $region27: #{tpu_custom_call.1} parent=1 // pred_check_branch
      %39 = sbr.rel (0) target = $region29
    $region28: #{tpu_custom_call.1} parent=1 // pred_region
      _
    $region29: #{tpu_custom_call.1} parent=1 // pred_fallthru
      _
    // Predicated region
    $region30: #{tpu_custom_call.1} parent=1 // pred_check
      _
    $region31: #{tpu_custom_call.1} parent=1 // pred_check_branch
      %41 = sbr.rel (0) target = $region33
    $region32: #{tpu_custom_call.1} parent=1 // pred_region
      _
    $region33: #{tpu_custom_call.1} parent=1 // pred_fallthru
      _
    // Predicated region
    $region34: #{tpu_custom_call.1} parent=1 // pred_check
      _
    $region35: #{tpu_custom_call.1} parent=1 // pred_check_branch
      %43 = sbr.rel (0) target = $region37
    $region36: #{tpu_custom_call.1} parent=1 // pred_region
      _
    $region37: #{tpu_custom_call.1} parent=1 // pred_fallthru
      _
    // Predicated region
    $region38: #{tpu_custom_call.1} parent=1 // pred_check
      _
    $region39: #{tpu_custom_call.1} parent=1 // pred_check_branch
      %45 = sbr.rel (0) target = $region41
    $region40: #{tpu_custom_call.1} parent=1 // pred_region
      _
    $region41: #{tpu_custom_call.1} parent=1 // pred_fallthru
      _
    // Predicated region
    $region42: #{tpu_custom_call.1} parent=1 // pred_check
      _
    $region43: #{tpu_custom_call.1} parent=1 // pred_check_branch
      %47 = sbr.rel (0) target = $region45
    $region44: #{tpu_custom_call.1} parent=1 // pred_region
      _
    $region45: #{tpu_custom_call.1} parent=1 // pred_fallthru
      _
    // Predicated region
    $region46: #{tpu_custom_call.1} parent=1 // pred_check
      _
    $region47: #{tpu_custom_call.1} parent=1 // pred_check_branch
      %49 = sbr.rel (0) target = $region49
    $region48: #{tpu_custom_call.1} parent=1 // pred_region
      _
    $region49: #{tpu_custom_call.1} parent=1 // pred_fallthru
      _
    // Predicated region
    $region50: #{tpu_custom_call.1} parent=1 // pred_check
      _
    $region51: #{tpu_custom_call.1} parent=1 // pred_check_branch
      %51 = sbr.rel (0) target = $region53
    $region52: #{tpu_custom_call.1} parent=1 // pred_region
      _
    $region53: #{tpu_custom_call.1} parent=1 // pred_fallthru
      _
    %s53 = smul.u32 0, 2
    %v54 = vld [vmem:[%s1] sm:$0xf]
    %v55 = vld [vmem:[%s1 + $0x4] sm:$0xf]
    %v56 = vld [vmem:[%s2] sm:$0xf]
    %v57 = vld [vmem:[%s2 + $0x4] sm:$0xf]
    %v58 = vld [vmem:[%s2 + $0x8] sm:$0xf]
    %v59 = vld [vmem:[%s2 + $0xc] sm:$0xf]
    %v60 = vld [vmem:[%s3] sm:$0x1]
    %v62 = vlaneseq
    %v63 = vshrl.u32 %v62, 7
    %v64 = vsub.s32 0, %v63
    %v65 = vrot.slane %v60, %v64
    %v69 = vunpack.c.l.b16 %v54
    %v70 = vunpack.c.l.b16 %v55
    %v71 = vpack.c.b16 %v70, %v69
    %v76 = vunpack.c.l.b16 %v56
    %v77 = vunpack.c.l.b16 %v57
    %v78 = vunpack.c.l.b16 %v58
    %v79 = vunpack.c.l.b16 %v59
    %v80 = vpack.c.b16 %v77, %v76
    %v81 = vpack.c.b16 %v79, %v78
    %vm84 = vcmask 261120
    %v86 = vsel %vm84, %v71, 0
    %88 = vmatprep.subr.bf16.mxu0 0
    %89 = vmatpush1.bf16.msra.mxu0 %v80
    %90 = vmatprep.subr.bf16.mxu0 0
    %91 = vmatpush1.bf16.msra.mxu0 %v81
    %92 = vmatprep.subr.bf16.mxu0 0
    %93 = vmatpush1.bf16.msra.mxu0 0
    %94 = vmatprep.subr.bf16.mxu0 0
    %95 = vmatpush1.bf16.msra.mxu0 0
    %96 = vmatprep.subr.bf16.mxu0 0
    %97 = vmatpush1.bf16.msra.mxu0 0
    %98 = vmatprep.subr.bf16.mxu0 0
    %99 = vmatpush1.bf16.msra.mxu0 0
    %100 = vmatprep.subr.bf16.mxu0 0
    %101 = vmatpush1.bf16.msra.mxu0 0
    %102 = vmatprep.subr.bf16.mxu0 0
    %103 = vmatpush1.bf16.msra.mxu0 0
    %104 = vmatprep.subr.bf16.mxu0 0
    %105 = vmatpush1.bf16.msra.mxu0 0
    %106 = vmatprep.subr.bf16.mxu0 0
    %107 = vmatpush1.bf16.msra.mxu0 0
    %108 = vmatprep.subr.bf16.mxu0 0
    %109 = vmatpush1.bf16.msra.mxu0 0
    %110 = vmatprep.subr.bf16.mxu0 0
    %111 = vmatpush1.bf16.msra.mxu0 0
    %112 = vmatprep.subr.bf16.mxu0 0
    %113 = vmatpush1.bf16.msra.mxu0 0
    %114 = vmatprep.subr.bf16.mxu0 0
    %115 = vmatpush1.bf16.msra.mxu0 0
    %116 = vmatprep.subr.bf16.mxu0 0
    %117 = vmatpush1.bf16.msra.mxu0 0
    %118 = vmatprep.subr.bf16.mxu0 0
    %119 = vmatpush1.bf16.msra.mxu0 0
    %120 = vmatprep.mubr.bf16.mxu0 0
    %121 = vmatmul.mubr.bf16.gmra.mrb[0].mxu0 %v86
    %v122 = vpop.f32.mrb[0].mxu0
    %v123 = vadd.f32 %v65, %v122
    %v124 = vpop.f32.mrb[0].mxu0
    %v125 = vpop.f32.mrb[0].mxu0
    %v126 = vadd.f32 %v65, %v125
    %v127 = vpop.f32.mrb[0].mxu0
    %128 = vdwg.mxu0
    %v129 = vmul.f32 %v123, 0.35355338
    %v130 = vmul.f32 %v126, 0.35355338
    %v131 = vlaneseq
    %v132 = vshrl.u32 %v131, 7
    %v133 = vlaneseq
    %v134 = vand.u32 %v133, 127
    %v135 = vadd.s32 %v132, 8
    %s136 = sld [smem:[#allocation4 + %s53]]
    %v137 = vstv %s136
    %vm138 = vcmp.lt.s32.totalorder %v132, %v137
    %vm139 = vcmp.lt.s32.totalorder %v134, %v137
    %vm140 = vmand %vm138, %vm139
    %vm141 = vcmp.ge.s32.totalorder %v132, 0
    %vm142 = vcmp.ge.s32.totalorder %v135, 0
    %vm143 = vcmp.lt.s32.totalorder %v135, %v137
    %vm144 = vmand %vm141, %vm138
    %vm145 = vmand %vm142, %vm143
    %v146 = vpack.c.bf16 %v129, %v129
    %v147 = vpack.c.bf16 %v123, %v123
    %149 = vrot.lane.b32.xlu0 %v147, 96
    %v150 = vpop.permute.xlu0 %149
    %vm151 = vcmask 64512
    %v153 = vsel %vm151, %v146, 0
    %v156 = vsel %vm151, %v150, 0
    %158 = vmatprep.subr.bf16.mxu0 0
    %159 = vmatpush1.bf16.xpose.msra.mxu0 %v156
    %160 = vmatprep.subr.bf16.mxu0 0
    %161 = vmatpush1.bf16.xpose.msra.mxu0 0
    %162 = vmatprep.subr.bf16.mxu0 0
    %163 = vmatpush1.bf16.xpose.msra.mxu0 0
    %164 = vmatprep.subr.bf16.mxu0 0
    %165 = vmatpush1.bf16.xpose.msra.mxu0 0
    %166 = vmatprep.subr.bf16.mxu0 0
    %167 = vmatpush1.bf16.xpose.msra.mxu0 0
    %168 = vmatprep.subr.bf16.mxu0 0
    %169 = vmatpush1.bf16.xpose.msra.mxu0 0
    %170 = vmatprep.subr.bf16.mxu0 0
    %171 = vmatpush1.bf16.xpose.msra.mxu0 0
    %172 = vmatprep.subr.bf16.mxu0 0
    %173 = vmatpush1.bf16.xpose.msra.mxu0 0
    %174 = vmatprep.subr.bf16.mxu0 0
    %175 = vmatpush1.bf16.xpose.msra.mxu0 0
    %176 = vmatprep.subr.bf16.mxu0 0
    %177 = vmatpush1.bf16.xpose.msra.mxu0 0
    %178 = vmatprep.subr.bf16.mxu0 0
    %179 = vmatpush1.bf16.xpose.msra.mxu0 0
    %180 = vmatprep.subr.bf16.mxu0 0
    %181 = vmatpush1.bf16.xpose.msra.mxu0 0
    %182 = vmatprep.subr.bf16.mxu0 0
    %183 = vmatpush1.bf16.xpose.msra.mxu0 0
    %184 = vmatprep.subr.bf16.mxu0 0
    %185 = vmatpush1.bf16.xpose.msra.mxu0 0
    %186 = vmatprep.subr.bf16.mxu0 0
    %187 = vmatpush1.bf16.xpose.msra.mxu0 0
    %188 = vmatprep.subr.bf16.mxu0 0
    %189 = vmatpush1.bf16.xpose.msra.mxu0 0
    %190 = vmatprep.mubr.bf16.mxu0 0
    %191 = vmatmul.mubr.bf16.gmra.mrb[0].mxu0 %v153
    %v192 = vpop.f32.mrb[0].mxu0
    %v193 = vadd.f32 0.0, %v192
    %v194 = vpop.f32.mrb[0].mxu0
    %v195 = vpop.f32.mrb[0].mxu0
    %v196 = vpop.f32.mrb[0].mxu0
    %197 = vdwg.mxu0
    %v198 = vsel %vm140, %v193, -1e+09
    %v199 = vsel %vm151, %v198, -inf
    %200 = vmax.xlane.f32.xlu0 %v199
    %v201 = vpop.xlane.xlu0 %200
    %v202 = vsub.f32 %v198, %v201
    %v203 = vmul.f32 %v202, 1.442695
    %v204 = vpow.pop %v203
    %v205 = vsel %vm151, %v204, 0.0
    %206 = vadd.xlane.f32.xlu0 %v205
    %v207 = vpop.xlane.xlu0 %206
    %v208 = vrcp.pop %v207
    %v209 = vmul.f32 %v204, %v208
    %v210 = vsel %vm140, %v209, 0.0
    %v211 = vpack.c.bf16 %v210, %v210
    %212 = vrot.lane.b32.xlu0 %v147, 64
    %v213 = vpop.permute.xlu0 %212
    %v215 = vsel %vm151, %v211, 0
    %vm217 = vcmask 1043456
    %v219 = vsel %vm217, %v213, 0
    %221 = vmatprep.subr.bf16.mxu0 0
    %222 = vmatpush1.bf16.msra.mxu0 %v219
    %223 = vmatprep.subr.bf16.mxu0 0
    %224 = vmatpush1.bf16.msra.mxu0 0
    %225 = vmatprep.subr.bf16.mxu0 0
    %226 = vmatpush1.bf16.msra.mxu0 0
    %227 = vmatprep.subr.bf16.mxu0 0
    %228 = vmatpush1.bf16.msra.mxu0 0
    %229 = vmatprep.subr.bf16.mxu0 0
    %230 = vmatpush1.bf16.msra.mxu0 0
    %231 = vmatprep.subr.bf16.mxu0 0
    %232 = vmatpush1.bf16.msra.mxu0 0
    %233 = vmatprep.subr.bf16.mxu0 0
    %234 = vmatpush1.bf16.msra.mxu0 0
    %235 = vmatprep.subr.bf16.mxu0 0
    %236 = vmatpush1.bf16.msra.mxu0 0
    %237 = vmatprep.subr.bf16.mxu0 0
    %238 = vmatpush1.bf16.msra.mxu0 0
    %239 = vmatprep.subr.bf16.mxu0 0
    %240 = vmatpush1.bf16.msra.mxu0 0
    %241 = vmatprep.subr.bf16.mxu0 0
    %242 = vmatpush1.bf16.msra.mxu0 0
    %243 = vmatprep.subr.bf16.mxu0 0
    %244 = vmatpush1.bf16.msra.mxu0 0
    %245 = vmatprep.subr.bf16.mxu0 0
    %246 = vmatpush1.bf16.msra.mxu0 0
    %247 = vmatprep.subr.bf16.mxu0 0
    %248 = vmatpush1.bf16.msra.mxu0 0
    %249 = vmatprep.subr.bf16.mxu0 0
    %250 = vmatpush1.bf16.msra.mxu0 0
    %251 = vmatprep.subr.bf16.mxu0 0
    %252 = vmatpush1.bf16.msra.mxu0 0
    %253 = vmatprep.mubr.bf16.mxu0 0
    %254 = vmatmul.mubr.bf16.gmra.mrb[0].mxu0 %v215
    %v255 = vpop.f32.mrb[0].mxu0
    %v256 = vadd.f32 0.0, %v255
    %v257 = vpop.f32.mrb[0].mxu0
    %v258 = vpop.f32.mrb[0].mxu0
    %v259 = vpop.f32.mrb[0].mxu0
    %260 = vdwg.mxu0
    %261 = vst.msk [vmem:[#allocation2] sm:$0xff] %vm151, %v256
    %263 = vrot.lane.b32.xlu0 %v146, 120
    %v264 = vpop.permute.xlu0 %263
    %265 = vrot.lane.b32.xlu0 %v147, 88
    %v266 = vpop.permute.xlu0 %265
    %v268 = vsel %vm151, %v264, 0
    %v271 = vsel %vm151, %v266, 0
    %273 = vmatprep.subr.bf16.mxu0 0
    %274 = vmatpush1.bf16.xpose.msra.mxu0 %v271
    %275 = vmatprep.subr.bf16.mxu0 0
    %276 = vmatpush1.bf16.xpose.msra.mxu0 0
    %277 = vmatprep.subr.bf16.mxu0 0
    %278 = vmatpush1.bf16.xpose.msra.mxu0 0
    %279 = vmatprep.subr.bf16.mxu0 0
    %280 = vmatpush1.bf16.xpose.msra.mxu0 0
    %281 = vmatprep.subr.bf16.mxu0 0
    %282 = vmatpush1.bf16.xpose.msra.mxu0 0
    %283 = vmatprep.subr.bf16.mxu0 0
    %284 = vmatpush1.bf16.xpose.msra.mxu0 0
    %285 = vmatprep.subr.bf16.mxu0 0
    %286 = vmatpush1.bf16.xpose.msra.mxu0 0
    %287 = vmatprep.subr.bf16.mxu0 0
    %288 = vmatpush1.bf16.xpose.msra.mxu0 0
    %289 = vmatprep.subr.bf16.mxu0 0
    %290 = vmatpush1.bf16.xpose.msra.mxu0 0
    %291 = vmatprep.subr.bf16.mxu0 0
    %292 = vmatpush1.bf16.xpose.msra.mxu0 0
    %293 = vmatprep.subr.bf16.mxu0 0
    %294 = vmatpush1.bf16.xpose.msra.mxu0 0
    %295 = vmatprep.subr.bf16.mxu0 0
    %296 = vmatpush1.bf16.xpose.msra.mxu0 0
    %297 = vmatprep.subr.bf16.mxu0 0
    %298 = vmatpush1.bf16.xpose.msra.mxu0 0
    %299 = vmatprep.subr.bf16.mxu0 0
    %300 = vmatpush1.bf16.xpose.msra.mxu0 0
    %301 = vmatprep.subr.bf16.mxu0 0
    %302 = vmatpush1.bf16.xpose.msra.mxu0 0
    %303 = vmatprep.subr.bf16.mxu0 0
    %304 = vmatpush1.bf16.xpose.msra.mxu0 0
    %305 = vmatprep.mubr.bf16.mxu0 0
    %306 = vmatmul.mubr.bf16.gmra.mrb[0].mxu0 %v268
    %v307 = vpop.f32.mrb[0].mxu0
    %v308 = vadd.f32 0.0, %v307
    %v309 = vpop.f32.mrb[0].mxu0
    %v310 = vpop.f32.mrb[0].mxu0
    %v311 = vpop.f32.mrb[0].mxu0
    %312 = vdwg.mxu0
    %v313 = vsel %vm140, %v308, -1e+09
    %v314 = vsel %vm151, %v313, -inf
    %315 = vmax.xlane.f32.xlu0 %v314
    %v316 = vpop.xlane.xlu0 %315
    %v317 = vsub.f32 %v313, %v316
    %v318 = vmul.f32 %v317, 1.442695
    %v319 = vpow.pop %v318
    %v320 = vsel %vm151, %v319, 0.0
    %321 = vadd.xlane.f32.xlu0 %v320
    %v322 = vpop.xlane.xlu0 %321
    %v323 = vrcp.pop %v322
    %v324 = vmul.f32 %v319, %v323
    %v325 = vsel %vm140, %v324, 0.0
    %v326 = vpack.c.bf16 %v325, %v325
    %327 = vrot.lane.b32.xlu0 %v147, 56
    %v328 = vpop.permute.xlu0 %327
    %v330 = vsel %vm151, %v326, 0
    %v333 = vsel %vm217, %v328, 0
    %335 = vmatprep.subr.bf16.mxu0 0
    %336 = vmatpush1.bf16.msra.mxu0 %v333
    %337 = vmatprep.subr.bf16.mxu0 0
    %338 = vmatpush1.bf16.msra.mxu0 0
    %339 = vmatprep.subr.bf16.mxu0 0
    %340 = vmatpush1.bf16.msra.mxu0 0
    %341 = vmatprep.subr.bf16.mxu0 0
    %342 = vmatpush1.bf16.msra.mxu0 0
    %343 = vmatprep.subr.bf16.mxu0 0
    %344 = vmatpush1.bf16.msra.mxu0 0
    %345 = vmatprep.subr.bf16.mxu0 0
    %346 = vmatpush1.bf16.msra.mxu0 0
    %347 = vmatprep.subr.bf16.mxu0 0
    %348 = vmatpush1.bf16.msra.mxu0 0
    %349 = vmatprep.subr.bf16.mxu0 0
    %350 = vmatpush1.bf16.msra.mxu0 0
    %351 = vmatprep.subr.bf16.mxu0 0
    %352 = vmatpush1.bf16.msra.mxu0 0
    %353 = vmatprep.subr.bf16.mxu0 0
    %354 = vmatpush1.bf16.msra.mxu0 0
    %355 = vmatprep.subr.bf16.mxu0 0
    %356 = vmatpush1.bf16.msra.mxu0 0
    %357 = vmatprep.subr.bf16.mxu0 0
    %358 = vmatpush1.bf16.msra.mxu0 0
    %359 = vmatprep.subr.bf16.mxu0 0
    %360 = vmatpush1.bf16.msra.mxu0 0
    %361 = vmatprep.subr.bf16.mxu0 0
    %362 = vmatpush1.bf16.msra.mxu0 0
    %363 = vmatprep.subr.bf16.mxu0 0
    %364 = vmatpush1.bf16.msra.mxu0 0
    %365 = vmatprep.subr.bf16.mxu0 0
    %366 = vmatpush1.bf16.msra.mxu0 0
    %367 = vmatprep.mubr.bf16.mxu0 0
    %368 = vmatmul.mubr.bf16.gmra.mrb[0].mxu0 %v330
    %v369 = vpop.f32.mrb[0].mxu0
    %v370 = vadd.f32 0.0, %v369
    %v371 = vpop.f32.mrb[0].mxu0
    %v372 = vpop.f32.mrb[0].mxu0
    %v373 = vpop.f32.mrb[0].mxu0
    %374 = vdwg.mxu0
    %376 = vrot.lane.b32.xlu0 %v370, 8
    %v377 = vpop.permute.xlu0 %376
    %vm379 = vcmask 130112
    %380 = vst.msk [vmem:[#allocation2] sm:$0xff] %vm379, %v377
    %381 = vrot.lane.b32.xlu0 %v146, 112
    %v382 = vpop.permute.xlu0 %381
    %383 = vrot.lane.b32.xlu0 %v147, 80
    %v384 = vpop.permute.xlu0 %383
    %v386 = vsel %vm151, %v382, 0
    %v389 = vsel %vm151, %v384, 0
    %391 = vmatprep.subr.bf16.mxu0 0
    %392 = vmatpush1.bf16.xpose.msra.mxu0 %v389
    %393 = vmatprep.subr.bf16.mxu0 0
    %394 = vmatpush1.bf16.xpose.msra.mxu0 0
    %395 = vmatprep.subr.bf16.mxu0 0
    %396 = vmatpush1.bf16.xpose.msra.mxu0 0
    %397 = vmatprep.subr.bf16.mxu0 0
    %398 = vmatpush1.bf16.xpose.msra.mxu0 0
    %399 = vmatprep.subr.bf16.mxu0 0
    %400 = vmatpush1.bf16.xpose.msra.mxu0 0
    %401 = vmatprep.subr.bf16.mxu0 0
    %402 = vmatpush1.bf16.xpose.msra.mxu0 0
    %403 = vmatprep.subr.bf16.mxu0 0
    %404 = vmatpush1.bf16.xpose.msra.mxu0 0
    %405 = vmatprep.subr.bf16.mxu0 0
    %406 = vmatpush1.bf16.xpose.msra.mxu0 0
    %407 = vmatprep.subr.bf16.mxu0 0
    %408 = vmatpush1.bf16.xpose.msra.mxu0 0
    %409 = vmatprep.subr.bf16.mxu0 0
    %410 = vmatpush1.bf16.xpose.msra.mxu0 0
    %411 = vmatprep.subr.bf16.mxu0 0
    %412 = vmatpush1.bf16.xpose.msra.mxu0 0
    %413 = vmatprep.subr.bf16.mxu0 0
    %414 = vmatpush1.bf16.xpose.msra.mxu0 0
    %415 = vmatprep.subr.bf16.mxu0 0
    %416 = vmatpush1.bf16.xpose.msra.mxu0 0
    %417 = vmatprep.subr.bf16.mxu0 0
    %418 = vmatpush1.bf16.xpose.msra.mxu0 0
    %419 = vmatprep.subr.bf16.mxu0 0
    %420 = vmatpush1.bf16.xpose.msra.mxu0 0
    %421 = vmatprep.subr.bf16.mxu0 0
    %422 = vmatpush1.bf16.xpose.msra.mxu0 0
    %423 = vmatprep.mubr.bf16.mxu0 0
    %424 = vmatmul.mubr.bf16.gmra.mrb[0].mxu0 %v386
    %v425 = vpop.f32.mrb[0].mxu0
    %v426 = vadd.f32 0.0, %v425
    %v427 = vpop.f32.mrb[0].mxu0
    %v428 = vpop.f32.mrb[0].mxu0
    %v429 = vpop.f32.mrb[0].mxu0
    %430 = vdwg.mxu0
    %v431 = vsel %vm140, %v426, -1e+09
    %v432 = vsel %vm151, %v431, -inf
    %433 = vmax.xlane.f32.xlu0 %v432
    %v434 = vpop.xlane.xlu0 %433
    %v435 = vsub.f32 %v431, %v434
    %v436 = vmul.f32 %v435, 1.442695
    %v437 = vpow.pop %v436
    %v438 = vsel %vm151, %v437, 0.0
    %439 = vadd.xlane.f32.xlu0 %v438
    %v440 = vpop.xlane.xlu0 %439
    %v441 = vrcp.pop %v440
    %v442 = vmul.f32 %v437, %v441
    %v443 = vsel %vm140, %v442, 0.0
    %v444 = vpack.c.bf16 %v443, %v443
    %445 = vrot.lane.b32.xlu0 %v147, 48
    %v446 = vpop.permute.xlu0 %445
    %v448 = vsel %vm151, %v444, 0
    %v451 = vsel %vm217, %v446, 0
    %453 = vmatprep.subr.bf16.mxu0 0
    %454 = vmatpush1.bf16.msra.mxu0 %v451
    %455 = vmatprep.subr.bf16.mxu0 0
    %456 = vmatpush1.bf16.msra.mxu0 0
    %457 = vmatprep.subr.bf16.mxu0 0
    %458 = vmatpush1.bf16.msra.mxu0 0
    %459 = vmatprep.subr.bf16.mxu0 0
    %460 = vmatpush1.bf16.msra.mxu0 0
    %461 = vmatprep.subr.bf16.mxu0 0
    %462 = vmatpush1.bf16.msra.mxu0 0
    %463 = vmatprep.subr.bf16.mxu0 0
    %464 = vmatpush1.bf16.msra.mxu0 0
    %465 = vmatprep.subr.bf16.mxu0 0
    %466 = vmatpush1.bf16.msra.mxu0 0
    %467 = vmatprep.subr.bf16.mxu0 0
    %468 = vmatpush1.bf16.msra.mxu0 0
    %469 = vmatprep.subr.bf16.mxu0 0
    %470 = vmatpush1.bf16.msra.mxu0 0
    %471 = vmatprep.subr.bf16.mxu0 0
    %472 = vmatpush1.bf16.msra.mxu0 0
    %473 = vmatprep.subr.bf16.mxu0 0
    %474 = vmatpush1.bf16.msra.mxu0 0
    %475 = vmatprep.subr.bf16.mxu0 0
    %476 = vmatpush1.bf16.msra.mxu0 0
    %477 = vmatprep.subr.bf16.mxu0 0
    %478 = vmatpush1.bf16.msra.mxu0 0
    %479 = vmatprep.subr.bf16.mxu0 0
    %480 = vmatpush1.bf16.msra.mxu0 0
    %481 = vmatprep.subr.bf16.mxu0 0
    %482 = vmatpush1.bf16.msra.mxu0 0
    %483 = vmatprep.subr.bf16.mxu0 0
    %484 = vmatpush1.bf16.msra.mxu0 0
    %485 = vmatprep.mubr.bf16.mxu0 0
    %486 = vmatmul.mubr.bf16.gmra.mrb[0].mxu0 %v448
    %v487 = vpop.f32.mrb[0].mxu0
    %v488 = vadd.f32 0.0, %v487
    %v489 = vpop.f32.mrb[0].mxu0
    %v490 = vpop.f32.mrb[0].mxu0
    %v491 = vpop.f32.mrb[0].mxu0
    %492 = vdwg.mxu0
    %494 = vrot.lane.b32.xlu0 %v488, 16
    %v495 = vpop.permute.xlu0 %494
    %vm497 = vcmask 195712
    %498 = vst.msk [vmem:[#allocation2] sm:$0xff] %vm497, %v495
    %499 = vrot.lane.b32.xlu0 %v146, 104
    %v500 = vpop.permute.xlu0 %499
    %501 = vrot.lane.b32.xlu0 %v147, 72
    %v502 = vpop.permute.xlu0 %501
    %v504 = vsel %vm151, %v500, 0
    %v507 = vsel %vm151, %v502, 0
    %509 = vmatprep.subr.bf16.mxu0 0
    %510 = vmatpush1.bf16.xpose.msra.mxu0 %v507
    %511 = vmatprep.subr.bf16.mxu0 0
    %512 = vmatpush1.bf16.xpose.msra.mxu0 0
    %513 = vmatprep.subr.bf16.mxu0 0
    %514 = vmatpush1.bf16.xpose.msra.mxu0 0
    %515 = vmatprep.subr.bf16.mxu0 0
    %516 = vmatpush1.bf16.xpose.msra.mxu0 0
    %517 = vmatprep.subr.bf16.mxu0 0
    %518 = vmatpush1.bf16.xpose.msra.mxu0 0
    %519 = vmatprep.subr.bf16.mxu0 0
    %520 = vmatpush1.bf16.xpose.msra.mxu0 0
    %521 = vmatprep.subr.bf16.mxu0 0
    %522 = vmatpush1.bf16.xpose.msra.mxu0 0
    %523 = vmatprep.subr.bf16.mxu0 0
    %524 = vmatpush1.bf16.xpose.msra.mxu0 0
    %525 = vmatprep.subr.bf16.mxu0 0
    %526 = vmatpush1.bf16.xpose.msra.mxu0 0
    %527 = vmatprep.subr.bf16.mxu0 0
    %528 = vmatpush1.bf16.xpose.msra.mxu0 0
    %529 = vmatprep.subr.bf16.mxu0 0
    %530 = vmatpush1.bf16.xpose.msra.mxu0 0
    %531 = vmatprep.subr.bf16.mxu0 0
    %532 = vmatpush1.bf16.xpose.msra.mxu0 0
    %533 = vmatprep.subr.bf16.mxu0 0
    %534 = vmatpush1.bf16.xpose.msra.mxu0 0
    %535 = vmatprep.subr.bf16.mxu0 0
    %536 = vmatpush1.bf16.xpose.msra.mxu0 0
    %537 = vmatprep.subr.bf16.mxu0 0
    %538 = vmatpush1.bf16.xpose.msra.mxu0 0
    %539 = vmatprep.subr.bf16.mxu0 0
    %540 = vmatpush1.bf16.xpose.msra.mxu0 0
    %541 = vmatprep.mubr.bf16.mxu0 0
    %542 = vmatmul.mubr.bf16.gmra.mrb[0].mxu0 %v504
    %v543 = vpop.f32.mrb[0].mxu0
    %v544 = vadd.f32 0.0, %v543
    %v545 = vpop.f32.mrb[0].mxu0
    %v546 = vpop.f32.mrb[0].mxu0
    %v547 = vpop.f32.mrb[0].mxu0
    %548 = vdwg.mxu0
    %v549 = vsel %vm140, %v544, -1e+09
    %v550 = vsel %vm151, %v549, -inf
    %551 = vmax.xlane.f32.xlu0 %v550
    %v552 = vpop.xlane.xlu0 %551
    %v553 = vsub.f32 %v549, %v552
    %v554 = vmul.f32 %v553, 1.442695
    %v555 = vpow.pop %v554
    %v556 = vsel %vm151, %v555, 0.0
    %557 = vadd.xlane.f32.xlu0 %v556
    %v558 = vpop.xlane.xlu0 %557
    %v559 = vrcp.pop %v558
    %v560 = vmul.f32 %v555, %v559
    %v561 = vsel %vm140, %v560, 0.0
    %v562 = vpack.c.bf16 %v561, %v561
    %563 = vrot.lane.b32.xlu0 %v147, 40
    %v564 = vpop.permute.xlu0 %563
    %v566 = vsel %vm151, %v562, 0
    %v569 = vsel %vm217, %v564, 0
    %571 = vmatprep.subr.bf16.mxu0 0
    %572 = vmatpush1.bf16.msra.mxu0 %v569
    %573 = vmatprep.subr.bf16.mxu0 0
    %574 = vmatpush1.bf16.msra.mxu0 0
    %575 = vmatprep.subr.bf16.mxu0 0
    %576 = vmatpush1.bf16.msra.mxu0 0
    %577 = vmatprep.subr.bf16.mxu0 0
    %578 = vmatpush1.bf16.msra.mxu0 0
    %579 = vmatprep.subr.bf16.mxu0 0
    %580 = vmatpush1.bf16.msra.mxu0 0
    %581 = vmatprep.subr.bf16.mxu0 0
    %582 = vmatpush1.bf16.msra.mxu0 0
    %583 = vmatprep.subr.bf16.mxu0 0
    %584 = vmatpush1.bf16.msra.mxu0 0
    %585 = vmatprep.subr.bf16.mxu0 0
    %586 = vmatpush1.bf16.msra.mxu0 0
    %587 = vmatprep.subr.bf16.mxu0 0
    %588 = vmatpush1.bf16.msra.mxu0 0
    %589 = vmatprep.subr.bf16.mxu0 0
    %590 = vmatpush1.bf16.msra.mxu0 0
    %591 = vmatprep.subr.bf16.mxu0 0
    %592 = vmatpush1.bf16.msra.mxu0 0
    %593 = vmatprep.subr.bf16.mxu0 0
    %594 = vmatpush1.bf16.msra.mxu0 0
    %595 = vmatprep.subr.bf16.mxu0 0
    %596 = vmatpush1.bf16.msra.mxu0 0
    %597 = vmatprep.subr.bf16.mxu0 0
    %598 = vmatpush1.bf16.msra.mxu0 0
    %599 = vmatprep.subr.bf16.mxu0 0
    %600 = vmatpush1.bf16.msra.mxu0 0
    %601 = vmatprep.subr.bf16.mxu0 0
    %602 = vmatpush1.bf16.msra.mxu0 0
    %603 = vmatprep.mubr.bf16.mxu0 0
    %604 = vmatmul.mubr.bf16.gmra.mrb[0].mxu0 %v566
    %v605 = vpop.f32.mrb[0].mxu0
    %v606 = vadd.f32 0.0, %v605
    %v607 = vpop.f32.mrb[0].mxu0
    %v608 = vpop.f32.mrb[0].mxu0
    %v609 = vpop.f32.mrb[0].mxu0
    %610 = vdwg.mxu0
    %612 = vrot.lane.b32.xlu0 %v606, 24
    %v613 = vpop.permute.xlu0 %612
    %vm615 = vcmask 261312
    %616 = vst.msk [vmem:[#allocation2] sm:$0xff] %vm615, %v613
    %s617 = sadd.s32 %s53, 1
    %s618 = sld [smem:[#allocation4 + %s617]]
    %v619 = vstv %s618
    %vm620 = vcmp.lt.s32.totalorder %v132, %v619
    %vm621 = vcmp.lt.s32.totalorder %v134, %v619
    %vm622 = vmand %vm620, %vm621
    %vm623 = vcmp.ge.s32.totalorder %v132, 8
    %vm624 = vcmp.ge.s32.totalorder %v135, 8
    %s625 = sadd.s32 %s618, 8
    %v626 = vstv %s625
    %vm627 = vcmp.lt.s32.totalorder %v132, %v626
    %vm628 = vcmp.lt.s32.totalorder %v135, %v626
    %vm629 = vmand %vm623, %vm627
    %vm630 = vmand %vm624, %vm628
    %vm631 = vmor %vm144, %vm629
    %vm632 = vmor %vm145, %vm630
    %v633 = vpack.c.bf16 %v130, %v130
    %v634 = vpack.c.bf16 %v126, %v126
    %636 = vrot.lane.b32.xlu0 %v634, 96
    %v637 = vpop.permute.xlu0 %636
    %v639 = vsel %vm151, %v633, 0
    %v642 = vsel %vm151, %v637, 0
    %644 = vmatprep.subr.bf16.mxu0 0
    %645 = vmatpush1.bf16.xpose.msra.mxu0 %v642
    %646 = vmatprep.subr.bf16.mxu0 0
    %647 = vmatpush1.bf16.xpose.msra.mxu0 0
    %648 = vmatprep.subr.bf16.mxu0 0
    %649 = vmatpush1.bf16.xpose.msra.mxu0 0
    %650 = vmatprep.subr.bf16.mxu0 0
    %651 = vmatpush1.bf16.xpose.msra.mxu0 0
    %652 = vmatprep.subr.bf16.mxu0 0
    %653 = vmatpush1.bf16.xpose.msra.mxu0 0
    %654 = vmatprep.subr.bf16.mxu0 0
    %655 = vmatpush1.bf16.xpose.msra.mxu0 0
    %656 = vmatprep.subr.bf16.mxu0 0
    %657 = vmatpush1.bf16.xpose.msra.mxu0 0
    %658 = vmatprep.subr.bf16.mxu0 0
    %659 = vmatpush1.bf16.xpose.msra.mxu0 0
    %660 = vmatprep.subr.bf16.mxu0 0
    %661 = vmatpush1.bf16.xpose.msra.mxu0 0
    %662 = vmatprep.subr.bf16.mxu0 0
    %663 = vmatpush1.bf16.xpose.msra.mxu0 0
    %664 = vmatprep.subr.bf16.mxu0 0
    %665 = vmatpush1.bf16.xpose.msra.mxu0 0
    %666 = vmatprep.subr.bf16.mxu0 0
    %667 = vmatpush1.bf16.xpose.msra.mxu0 0
    %668 = vmatprep.subr.bf16.mxu0 0
    %669 = vmatpush1.bf16.xpose.msra.mxu0 0
    %670 = vmatprep.subr.bf16.mxu0 0
    %671 = vmatpush1.bf16.xpose.msra.mxu0 0
    %672 = vmatprep.subr.bf16.mxu0 0
    %673 = vmatpush1.bf16.xpose.msra.mxu0 0
    %674 = vmatprep.subr.bf16.mxu0 0
    %675 = vmatpush1.bf16.xpose.msra.mxu0 0
    %676 = vmatprep.mubr.bf16.mxu0 0
    %677 = vmatmul.mubr.bf16.gmra.mrb[0].mxu0 %v639
    %v678 = vpop.f32.mrb[0].mxu0
    %v679 = vadd.f32 0.0, %v678
    %v680 = vpop.f32.mrb[0].mxu0
    %v681 = vpop.f32.mrb[0].mxu0
    %v682 = vpop.f32.mrb[0].mxu0
    %683 = vdwg.mxu0
    %v684 = vsel %vm622, %v679, -1e+09
    %v685 = vsel %vm151, %v684, -inf
    %686 = vmax.xlane.f32.xlu0 %v685
    %v687 = vpop.xlane.xlu0 %686
    %v688 = vsub.f32 %v684, %v687
    %v689 = vmul.f32 %v688, 1.442695
    %v690 = vpow.pop %v689
    %v691 = vsel %vm151, %v690, 0.0
    %692 = vadd.xlane.f32.xlu0 %v691
    %v693 = vpop.xlane.xlu0 %692
    %v694 = vrcp.pop %v693
    %v695 = vmul.f32 %v690, %v694
    %v696 = vsel %vm622, %v695, 0.0
    %v697 = vpack.c.bf16 %v696, %v696
    %698 = vrot.lane.b32.xlu0 %v634, 64
    %v699 = vpop.permute.xlu0 %698
    %v701 = vsel %vm151, %v697, 0
    %v704 = vsel %vm217, %v699, 0
    %706 = vmatprep.subr.bf16.mxu0 0
    %707 = vmatpush1.bf16.msra.mxu0 %v704
    %708 = vmatprep.subr.bf16.mxu0 0
    %709 = vmatpush1.bf16.msra.mxu0 0
    %710 = vmatprep.subr.bf16.mxu0 0
    %711 = vmatpush1.bf16.msra.mxu0 0
    %712 = vmatprep.subr.bf16.mxu0 0
    %713 = vmatpush1.bf16.msra.mxu0 0
    %714 = vmatprep.subr.bf16.mxu0 0
    %715 = vmatpush1.bf16.msra.mxu0 0
    %716 = vmatprep.subr.bf16.mxu0 0
    %717 = vmatpush1.bf16.msra.mxu0 0
    %718 = vmatprep.subr.bf16.mxu0 0
    %719 = vmatpush1.bf16.msra.mxu0 0
    %720 = vmatprep.subr.bf16.mxu0 0
    %721 = vmatpush1.bf16.msra.mxu0 0
    %722 = vmatprep.subr.bf16.mxu0 0
    %723 = vmatpush1.bf16.msra.mxu0 0
    %724 = vmatprep.subr.bf16.mxu0 0
    %725 = vmatpush1.bf16.msra.mxu0 0
    %726 = vmatprep.subr.bf16.mxu0 0
    %727 = vmatpush1.bf16.msra.mxu0 0
    %728 = vmatprep.subr.bf16.mxu0 0
    %729 = vmatpush1.bf16.msra.mxu0 0
    %730 = vmatprep.subr.bf16.mxu0 0
    %731 = vmatpush1.bf16.msra.mxu0 0
    %732 = vmatprep.subr.bf16.mxu0 0
    %733 = vmatpush1.bf16.msra.mxu0 0
    %734 = vmatprep.subr.bf16.mxu0 0
    %735 = vmatpush1.bf16.msra.mxu0 0
    %736 = vmatprep.subr.bf16.mxu0 0
    %737 = vmatpush1.bf16.msra.mxu0 0
    %738 = vmatprep.mubr.bf16.mxu0 0
    %739 = vmatmul.mubr.bf16.gmra.mrb[0].mxu0 %v701
    %v740 = vpop.f32.mrb[0].mxu0
    %v741 = vadd.f32 0.0, %v740
    %v742 = vpop.f32.mrb[0].mxu0
    %v743 = vpop.f32.mrb[0].mxu0
    %v744 = vpop.f32.mrb[0].mxu0
    %745 = vdwg.mxu0
    %746 = vst.msk [vmem:[#allocation2 + $0x8] sm:$0xff] %vm151, %v741
    %748 = vrot.lane.b32.xlu0 %v633, 120
    %v749 = vpop.permute.xlu0 %748
    %750 = vrot.lane.b32.xlu0 %v634, 88
    %v751 = vpop.permute.xlu0 %750
    %v753 = vsel %vm151, %v749, 0
    %v756 = vsel %vm151, %v751, 0
    %758 = vmatprep.subr.bf16.mxu0 0
    %759 = vmatpush1.bf16.xpose.msra.mxu0 %v756
    %760 = vmatprep.subr.bf16.mxu0 0
    %761 = vmatpush1.bf16.xpose.msra.mxu0 0
    %762 = vmatprep.subr.bf16.mxu0 0
    %763 = vmatpush1.bf16.xpose.msra.mxu0 0
    %764 = vmatprep.subr.bf16.mxu0 0
    %765 = vmatpush1.bf16.xpose.msra.mxu0 0
    %766 = vmatprep.subr.bf16.mxu0 0
    %767 = vmatpush1.bf16.xpose.msra.mxu0 0
    %768 = vmatprep.subr.bf16.mxu0 0
    %769 = vmatpush1.bf16.xpose.msra.mxu0 0
    %770 = vmatprep.subr.bf16.mxu0 0
    %771 = vmatpush1.bf16.xpose.msra.mxu0 0
    %772 = vmatprep.subr.bf16.mxu0 0
    %773 = vmatpush1.bf16.xpose.msra.mxu0 0
    %774 = vmatprep.subr.bf16.mxu0 0
    %775 = vmatpush1.bf16.xpose.msra.mxu0 0
    %776 = vmatprep.subr.bf16.mxu0 0
    %777 = vmatpush1.bf16.xpose.msra.mxu0 0
    %778 = vmatprep.subr.bf16.mxu0 0
    %779 = vmatpush1.bf16.xpose.msra.mxu0 0
    %780 = vmatprep.subr.bf16.mxu0 0
    %781 = vmatpush1.bf16.xpose.msra.mxu0 0
    %782 = vmatprep.subr.bf16.mxu0 0
    %783 = vmatpush1.bf16.xpose.msra.mxu0 0
    %784 = vmatprep.subr.bf16.mxu0 0
    %785 = vmatpush1.bf16.xpose.msra.mxu0 0
    %786 = vmatprep.subr.bf16.mxu0 0
    %787 = vmatpush1.bf16.xpose.msra.mxu0 0
    %788 = vmatprep.subr.bf16.mxu0 0
    %789 = vmatpush1.bf16.xpose.msra.mxu0 0
    %790 = vmatprep.mubr.bf16.mxu0 0
    %791 = vmatmul.mubr.bf16.gmra.mrb[0].mxu0 %v753
    %v792 = vpop.f32.mrb[0].mxu0
    %v793 = vadd.f32 0.0, %v792
    %v794 = vpop.f32.mrb[0].mxu0
    %v795 = vpop.f32.mrb[0].mxu0
    %v796 = vpop.f32.mrb[0].mxu0
    %797 = vdwg.mxu0
    %v798 = vsel %vm622, %v793, -1e+09
    %v799 = vsel %vm151, %v798, -inf
    %800 = vmax.xlane.f32.xlu0 %v799
    %v801 = vpop.xlane.xlu0 %800
    %v802 = vsub.f32 %v798, %v801
    %v803 = vmul.f32 %v802, 1.442695
    %v804 = vpow.pop %v803
    %v805 = vsel %vm151, %v804, 0.0
    %806 = vadd.xlane.f32.xlu0 %v805
    %v807 = vpop.xlane.xlu0 %806
    %v808 = vrcp.pop %v807
    %v809 = vmul.f32 %v804, %v808
    %v810 = vsel %vm622, %v809, 0.0
    %v811 = vpack.c.bf16 %v810, %v810
    %812 = vrot.lane.b32.xlu0 %v634, 56
    %v813 = vpop.permute.xlu0 %812
    %v815 = vsel %vm151, %v811, 0
    %v818 = vsel %vm217, %v813, 0
    %820 = vmatprep.subr.bf16.mxu0 0
    %821 = vmatpush1.bf16.msra.mxu0 %v818
    %822 = vmatprep.subr.bf16.mxu0 0
    %823 = vmatpush1.bf16.msra.mxu0 0
    %824 = vmatprep.subr.bf16.mxu0 0
    %825 = vmatpush1.bf16.msra.mxu0 0
    %826 = vmatprep.subr.bf16.mxu0 0
    %827 = vmatpush1.bf16.msra.mxu0 0
    %828 = vmatprep.subr.bf16.mxu0 0
    %829 = vmatpush1.bf16.msra.mxu0 0
    %830 = vmatprep.subr.bf16.mxu0 0
    %831 = vmatpush1.bf16.msra.mxu0 0
    %832 = vmatprep.subr.bf16.mxu0 0
    %833 = vmatpush1.bf16.msra.mxu0 0
    %834 = vmatprep.subr.bf16.mxu0 0
    %835 = vmatpush1.bf16.msra.mxu0 0
    %836 = vmatprep.subr.bf16.mxu0 0
    %837 = vmatpush1.bf16.msra.mxu0 0
    %838 = vmatprep.subr.bf16.mxu0 0
    %839 = vmatpush1.bf16.msra.mxu0 0
    %840 = vmatprep.subr.bf16.mxu0 0
    %841 = vmatpush1.bf16.msra.mxu0 0
    %842 = vmatprep.subr.bf16.mxu0 0
    %843 = vmatpush1.bf16.msra.mxu0 0
    %844 = vmatprep.subr.bf16.mxu0 0
    %845 = vmatpush1.bf16.msra.mxu0 0
    %846 = vmatprep.subr.bf16.mxu0 0
    %847 = vmatpush1.bf16.msra.mxu0 0
    %848 = vmatprep.subr.bf16.mxu0 0
    %849 = vmatpush1.bf16.msra.mxu0 0
    %850 = vmatprep.subr.bf16.mxu0 0
    %851 = vmatpush1.bf16.msra.mxu0 0
    %852 = vmatprep.mubr.bf16.mxu0 0
    %853 = vmatmul.mubr.bf16.gmra.mrb[0].mxu0 %v815
    %v854 = vpop.f32.mrb[0].mxu0
    %v855 = vadd.f32 0.0, %v854
    %v856 = vpop.f32.mrb[0].mxu0
    %v857 = vpop.f32.mrb[0].mxu0
    %v858 = vpop.f32.mrb[0].mxu0
    %859 = vdwg.mxu0
    %861 = vrot.lane.b32.xlu0 %v855, 8
    %v862 = vpop.permute.xlu0 %861
    %864 = vst.msk [vmem:[#allocation2 + $0x8] sm:$0xff] %vm379, %v862
    %865 = vrot.lane.b32.xlu0 %v633, 112
    %v866 = vpop.permute.xlu0 %865
    %867 = vrot.lane.b32.xlu0 %v634, 80
    %v868 = vpop.permute.xlu0 %867
    %v870 = vsel %vm151, %v866, 0
    %v873 = vsel %vm151, %v868, 0
    %875 = vmatprep.subr.bf16.mxu0 0
    %876 = vmatpush1.bf16.xpose.msra.mxu0 %v873
    %877 = vmatprep.subr.bf16.mxu0 0
    %878 = vmatpush1.bf16.xpose.msra.mxu0 0
    %879 = vmatprep.subr.bf16.mxu0 0
    %880 = vmatpush1.bf16.xpose.msra.mxu0 0
    %881 = vmatprep.subr.bf16.mxu0 0
    %882 = vmatpush1.bf16.xpose.msra.mxu0 0
    %883 = vmatprep.subr.bf16.mxu0 0
    %884 = vmatpush1.bf16.xpose.msra.mxu0 0
    %885 = vmatprep.subr.bf16.mxu0 0
    %886 = vmatpush1.bf16.xpose.msra.mxu0 0
    %887 = vmatprep.subr.bf16.mxu0 0
    %888 = vmatpush1.bf16.xpose.msra.mxu0 0
    %889 = vmatprep.subr.bf16.mxu0 0
    %890 = vmatpush1.bf16.xpose.msra.mxu0 0
    %891 = vmatprep.subr.bf16.mxu0 0
    %892 = vmatpush1.bf16.xpose.msra.mxu0 0
    %893 = vmatprep.subr.bf16.mxu0 0
    %894 = vmatpush1.bf16.xpose.msra.mxu0 0
    %895 = vmatprep.subr.bf16.mxu0 0
    %896 = vmatpush1.bf16.xpose.msra.mxu0 0
    %897 = vmatprep.subr.bf16.mxu0 0
    %898 = vmatpush1.bf16.xpose.msra.mxu0 0
    %899 = vmatprep.subr.bf16.mxu0 0
    %900 = vmatpush1.bf16.xpose.msra.mxu0 0
    %901 = vmatprep.subr.bf16.mxu0 0
    %902 = vmatpush1.bf16.xpose.msra.mxu0 0
    %903 = vmatprep.subr.bf16.mxu0 0
    %904 = vmatpush1.bf16.xpose.msra.mxu0 0
    %905 = vmatprep.subr.bf16.mxu0 0
    %906 = vmatpush1.bf16.xpose.msra.mxu0 0
    %907 = vmatprep.mubr.bf16.mxu0 0
    %908 = vmatmul.mubr.bf16.gmra.mrb[0].mxu0 %v870
    %v909 = vpop.f32.mrb[0].mxu0
    %v910 = vadd.f32 0.0, %v909
    %v911 = vpop.f32.mrb[0].mxu0
    %v912 = vpop.f32.mrb[0].mxu0
    %v913 = vpop.f32.mrb[0].mxu0
    %914 = vdwg.mxu0
    %v915 = vsel %vm622, %v910, -1e+09
    %v916 = vsel %vm151, %v915, -inf
    %917 = vmax.xlane.f32.xlu0 %v916
    %v918 = vpop.xlane.xlu0 %917
    %v919 = vsub.f32 %v915, %v918
    %v920 = vmul.f32 %v919, 1.442695
    %v921 = vpow.pop %v920
    %v922 = vsel %vm151, %v921, 0.0
    %923 = vadd.xlane.f32.xlu0 %v922
    %v924 = vpop.xlane.xlu0 %923
    %v925 = vrcp.pop %v924
    %v926 = vmul.f32 %v921, %v925
    %v927 = vsel %vm622, %v926, 0.0
    %v928 = vpack.c.bf16 %v927, %v927
    %929 = vrot.lane.b32.xlu0 %v634, 48
    %v930 = vpop.permute.xlu0 %929
    %v932 = vsel %vm151, %v928, 0
    %v935 = vsel %vm217, %v930, 0
    %937 = vmatprep.subr.bf16.mxu0 0
    %938 = vmatpush1.bf16.msra.mxu0 %v935
    %939 = vmatprep.subr.bf16.mxu0 0
    %940 = vmatpush1.bf16.msra.mxu0 0
    %941 = vmatprep.subr.bf16.mxu0 0
    %942 = vmatpush1.bf16.msra.mxu0 0
    %943 = vmatprep.subr.bf16.mxu0 0
    %944 = vmatpush1.bf16.msra.mxu0 0
    %945 = vmatprep.subr.bf16.mxu0 0
    %946 = vmatpush1.bf16.msra.mxu0 0
    %947 = vmatprep.subr.bf16.mxu0 0
    %948 = vmatpush1.bf16.msra.mxu0 0
    %949 = vmatprep.subr.bf16.mxu0 0
    %950 = vmatpush1.bf16.msra.mxu0 0
    %951 = vmatprep.subr.bf16.mxu0 0
    %952 = vmatpush1.bf16.msra.mxu0 0
    %953 = vmatprep.subr.bf16.mxu0 0
    %954 = vmatpush1.bf16.msra.mxu0 0
    %955 = vmatprep.subr.bf16.mxu0 0
    %956 = vmatpush1.bf16.msra.mxu0 0
    %957 = vmatprep.subr.bf16.mxu0 0
    %958 = vmatpush1.bf16.msra.mxu0 0
    %959 = vmatprep.subr.bf16.mxu0 0
    %960 = vmatpush1.bf16.msra.mxu0 0
    %961 = vmatprep.subr.bf16.mxu0 0
    %962 = vmatpush1.bf16.msra.mxu0 0
    %963 = vmatprep.subr.bf16.mxu0 0
    %964 = vmatpush1.bf16.msra.mxu0 0
    %965 = vmatprep.subr.bf16.mxu0 0
    %966 = vmatpush1.bf16.msra.mxu0 0
    %967 = vmatprep.subr.bf16.mxu0 0
    %968 = vmatpush1.bf16.msra.mxu0 0
    %969 = vmatprep.mubr.bf16.mxu0 0
    %970 = vmatmul.mubr.bf16.gmra.mrb[0].mxu0 %v932
    %v971 = vpop.f32.mrb[0].mxu0
    %v972 = vadd.f32 0.0, %v971
    %v973 = vpop.f32.mrb[0].mxu0
    %v974 = vpop.f32.mrb[0].mxu0
    %v975 = vpop.f32.mrb[0].mxu0
    %976 = vdwg.mxu0
    %978 = vrot.lane.b32.xlu0 %v972, 16
    %v979 = vpop.permute.xlu0 %978
    %981 = vst.msk [vmem:[#allocation2 + $0x8] sm:$0xff] %vm497, %v979
    %982 = vrot.lane.b32.xlu0 %v633, 104
    %v983 = vpop.permute.xlu0 %982
    %984 = vrot.lane.b32.xlu0 %v634, 72
    %v985 = vpop.permute.xlu0 %984
    %v987 = vsel %vm151, %v983, 0
    %v990 = vsel %vm151, %v985, 0
    %992 = vmatprep.subr.bf16.mxu0 0
    %993 = vmatpush1.bf16.xpose.msra.mxu0 %v990
    %994 = vmatprep.subr.bf16.mxu0 0
    %995 = vmatpush1.bf16.xpose.msra.mxu0 0
    %996 = vmatprep.subr.bf16.mxu0 0
    %997 = vmatpush1.bf16.xpose.msra.mxu0 0
    %998 = vmatprep.subr.bf16.mxu0 0
    %999 = vmatpush1.bf16.xpose.msra.mxu0 0
    %1000 = vmatprep.subr.bf16.mxu0 0
    %1001 = vmatpush1.bf16.xpose.msra.mxu0 0
    %1002 = vmatprep.subr.bf16.mxu0 0
    %1003 = vmatpush1.bf16.xpose.msra.mxu0 0
    %1004 = vmatprep.subr.bf16.mxu0 0
    %1005 = vmatpush1.bf16.xpose.msra.mxu0 0
    %1006 = vmatprep.subr.bf16.mxu0 0
    %1007 = vmatpush1.bf16.xpose.msra.mxu0 0
    %1008 = vmatprep.subr.bf16.mxu0 0
    %1009 = vmatpush1.bf16.xpose.msra.mxu0 0
    %1010 = vmatprep.subr.bf16.mxu0 0
    %1011 = vmatpush1.bf16.xpose.msra.mxu0 0
    %1012 = vmatprep.subr.bf16.mxu0 0
    %1013 = vmatpush1.bf16.xpose.msra.mxu0 0
    %1014 = vmatprep.subr.bf16.mxu0 0
    %1015 = vmatpush1.bf16.xpose.msra.mxu0 0
    %1016 = vmatprep.subr.bf16.mxu0 0
    %1017 = vmatpush1.bf16.xpose.msra.mxu0 0
    %1018 = vmatprep.subr.bf16.mxu0 0
    %1019 = vmatpush1.bf16.xpose.msra.mxu0 0
    %1020 = vmatprep.subr.bf16.mxu0 0
    %1021 = vmatpush1.bf16.xpose.msra.mxu0 0
    %1022 = vmatprep.subr.bf16.mxu0 0
    %1023 = vmatpush1.bf16.xpose.msra.mxu0 0
    %1024 = vmatprep.mubr.bf16.mxu0 0
    %1025 = vmatmul.mubr.bf16.gmra.mrb[0].mxu0 %v987
    %v1026 = vpop.f32.mrb[0].mxu0
    %v1027 = vadd.f32 0.0, %v1026
    %v1028 = vpop.f32.mrb[0].mxu0
    %v1029 = vpop.f32.mrb[0].mxu0
    %v1030 = vpop.f32.mrb[0].mxu0
    %1031 = vdwg.mxu0
    %v1032 = vsel %vm622, %v1027, -1e+09
    %v1033 = vsel %vm151, %v1032, -inf
    %1034 = vmax.xlane.f32.xlu0 %v1033
    %v1035 = vpop.xlane.xlu0 %1034
    %v1036 = vsub.f32 %v1032, %v1035
    %v1037 = vmul.f32 %v1036, 1.442695
    %v1038 = vpow.pop %v1037
    %v1039 = vsel %vm151, %v1038, 0.0
    %1040 = vadd.xlane.f32.xlu0 %v1039
    %v1041 = vpop.xlane.xlu0 %1040
    %v1042 = vrcp.pop %v1041
    %v1043 = vmul.f32 %v1038, %v1042
    %v1044 = vsel %vm622, %v1043, 0.0
    %v1045 = vpack.c.bf16 %v1044, %v1044
    %1046 = vrot.lane.b32.xlu0 %v634, 40
    %v1047 = vpop.permute.xlu0 %1046
    %v1049 = vsel %vm151, %v1045, 0
    %v1052 = vsel %vm217, %v1047, 0
    %1054 = vmatprep.subr.bf16.mxu0 0
    %1055 = vmatpush1.bf16.msra.mxu0 %v1052
    %1056 = vmatprep.subr.bf16.mxu0 0
    %1057 = vmatpush1.bf16.msra.mxu0 0
    %1058 = vmatprep.subr.bf16.mxu0 0
    %1059 = vmatpush1.bf16.msra.mxu0 0
    %1060 = vmatprep.subr.bf16.mxu0 0
    %1061 = vmatpush1.bf16.msra.mxu0 0
    %1062 = vmatprep.subr.bf16.mxu0 0
    %1063 = vmatpush1.bf16.msra.mxu0 0
    %1064 = vmatprep.subr.bf16.mxu0 0
    %1065 = vmatpush1.bf16.msra.mxu0 0
    %1066 = vmatprep.subr.bf16.mxu0 0
    %1067 = vmatpush1.bf16.msra.mxu0 0
    %1068 = vmatprep.subr.bf16.mxu0 0
    %1069 = vmatpush1.bf16.msra.mxu0 0
    %1070 = vmatprep.subr.bf16.mxu0 0
    %1071 = vmatpush1.bf16.msra.mxu0 0
    %1072 = vmatprep.subr.bf16.mxu0 0
    %1073 = vmatpush1.bf16.msra.mxu0 0
    %1074 = vmatprep.subr.bf16.mxu0 0
    %1075 = vmatpush1.bf16.msra.mxu0 0
    %1076 = vmatprep.subr.bf16.mxu0 0
    %1077 = vmatpush1.bf16.msra.mxu0 0
    %1078 = vmatprep.subr.bf16.mxu0 0
    %1079 = vmatpush1.bf16.msra.mxu0 0
    %1080 = vmatprep.subr.bf16.mxu0 0
    %1081 = vmatpush1.bf16.msra.mxu0 0
    %1082 = vmatprep.subr.bf16.mxu0 0
    %1083 = vmatpush1.bf16.msra.mxu0 0
    %1084 = vmatprep.subr.bf16.mxu0 0
    %1085 = vmatpush1.bf16.msra.mxu0 0
    %1086 = vmatprep.mubr.bf16.mxu0 0
    %1087 = vmatmul.mubr.bf16.gmra.mrb[0].mxu0 %v1049
    %v1088 = vpop.f32.mrb[0].mxu0
    %v1089 = vadd.f32 0.0, %v1088
    %v1090 = vpop.f32.mrb[0].mxu0
    %v1091 = vpop.f32.mrb[0].mxu0
    %v1092 = vpop.f32.mrb[0].mxu0
    %1093 = vdwg.mxu0
    %1095 = vrot.lane.b32.xlu0 %v1089, 24
    %v1096 = vpop.permute.xlu0 %1095
    %1098 = vst.msk [vmem:[#allocation2 + $0x8] sm:$0xff] %vm615, %v1096
    %v1099 = vld [vmem:[#allocation2] sm:$0xff]
    %v1100 = vld [vmem:[#allocation2 + $0x8] sm:$0xff]
    %v1101 = vpack.c.bf16 %v1100, %v1099
    %v1102 = vld [vmem:[%s4] sm:$0xf]
    %v1103 = vld [vmem:[%s4 + $0x4] sm:$0xf]
    %v1104 = vld [vmem:[%s4 + $0x8] sm:$0xf]
    %v1105 = vld [vmem:[%s4 + $0xc] sm:$0xf]
    %v1106 = vld [vmem:[%s5] sm:$0x1]
    %v1108 = vlaneseq
    %v1109 = vshrl.u32 %v1108, 7
    %v1110 = vsub.s32 0, %v1109
    %v1111 = vrot.slane %v1106, %v1110
    %v1117 = vunpack.c.l.b16 %v1102
    %v1118 = vunpack.c.l.b16 %v1103
    %v1119 = vunpack.c.l.b16 %v1104
    %v1120 = vunpack.c.l.b16 %v1105
    %v1121 = vpack.c.b16 %v1118, %v1117
    %v1122 = vpack.c.b16 %v1120, %v1119
    %v1126 = vsel %vm84, %v1101, 0
    %1128 = vmatprep.subr.bf16.mxu0 0
    %1129 = vmatpush1.bf16.msra.mxu0 %v1121
    %1130 = vmatprep.subr.bf16.mxu0 0
    %1131 = vmatpush1.bf16.msra.mxu0 %v1122
    %1132 = vmatprep.subr.bf16.mxu0 0
    %1133 = vmatpush1.bf16.msra.mxu0 0
    %1134 = vmatprep.subr.bf16.mxu0 0
    %1135 = vmatpush1.bf16.msra.mxu0 0
    %1136 = vmatprep.subr.bf16.mxu0 0
    %1137 = vmatpush1.bf16.msra.mxu0 0
    %1138 = vmatprep.subr.bf16.mxu0 0
    %1139 = vmatpush1.bf16.msra.mxu0 0
    %1140 = vmatprep.subr.bf16.mxu0 0
    %1141 = vmatpush1.bf16.msra.mxu0 0
    %1142 = vmatprep.subr.bf16.mxu0 0
    %1143 = vmatpush1.bf16.msra.mxu0 0
    %1144 = vmatprep.subr.bf16.mxu0 0
    %1145 = vmatpush1.bf16.msra.mxu0 0
    %1146 = vmatprep.subr.bf16.mxu0 0
    %1147 = vmatpush1.bf16.msra.mxu0 0
    %1148 = vmatprep.subr.bf16.mxu0 0
    %1149 = vmatpush1.bf16.msra.mxu0 0
    %1150 = vmatprep.subr.bf16.mxu0 0
    %1151 = vmatpush1.bf16.msra.mxu0 0
    %1152 = vmatprep.subr.bf16.mxu0 0
    %1153 = vmatpush1.bf16.msra.mxu0 0
    %1154 = vmatprep.subr.bf16.mxu0 0
    %1155 = vmatpush1.bf16.msra.mxu0 0
    %1156 = vmatprep.subr.bf16.mxu0 0
    %1157 = vmatpush1.bf16.msra.mxu0 0
    %1158 = vmatprep.subr.bf16.mxu0 0
    %1159 = vmatpush1.bf16.msra.mxu0 0
    %1160 = vmatprep.mubr.bf16.mxu0 0
    %1161 = vmatmul.mubr.bf16.gmra.mrb[0].mxu0 %v1126
    %v1162 = vpop.f32.mrb[0].mxu0
    %v1163 = vadd.f32 %v1111, %v1162
    %v1164 = vpop.f32.mrb[0].mxu0
    %v1165 = vpop.f32.mrb[0].mxu0
    %v1166 = vadd.f32 %v1111, %v1165
    %v1167 = vpop.f32.mrb[0].mxu0
    %1168 = vdwg.mxu0
    %v1169 = vunpack.c.l.bf16 %v54
    %v1170 = vunpack.c.l.bf16 %v55
    %v1171 = vadd.f32 %v1169, %v1163
    %v1172 = vadd.f32 %v1170, %v1166
    %v1173 = vld [vmem:[%s6] sm:$0x1]
    %v1174 = vld [vmem:[%s7] sm:$0x1]
    %v1175 = vsel %vm84, %v1171, 0.0
    %1176 = vadd.xlane.f32.xlu0 %v1175
    %v1177 = vpop.xlane.xlu0 %1176
    %v1178 = vsel %vm84, %v1172, 0.0
    %1179 = vadd.xlane.f32.xlu0 %v1178
    %v1180 = vpop.xlane.xlu0 %1179
    %v1181 = vrcp.pop 32.0
    %v1182 = vmul.f32 %v1177, %v1181
    %v1183 = vmul.f32 %v1180, %v1181
    %v1184 = vsub.f32 %v1171, %v1182
    %v1185 = vsub.f32 %v1172, %v1183
    %v1186 = vmul.f32 %v1184, %v1184
    %v1187 = vmul.f32 %v1185, %v1185
    %v1188 = vsel %vm84, %v1186, 0.0
    %1189 = vadd.xlane.f32.xlu0 %v1188
    %v1190 = vpop.xlane.xlu0 %1189
    %v1191 = vsel %vm84, %v1187, 0.0
    %1192 = vadd.xlane.f32.xlu0 %v1191
    %v1193 = vpop.xlane.xlu0 %1192
    %v1194 = vmul.f32 %v1190, %v1181
    %v1195 = vmul.f32 %v1193, %v1181
    %v1196 = vadd.f32 %v1194, 1e-05
    %v1197 = vadd.f32 %v1195, 1e-05
    %v1198 = vrsqrt.pop %v1196
    %v1199 = vrsqrt.pop %v1197
    %v1200 = vmul.f32 %v1184, %v1198
    %v1201 = vmul.f32 %v1185, %v1199
    %v1203 = vlaneseq
    %v1204 = vshrl.u32 %v1203, 7
    %v1205 = vsub.s32 0, %v1204
    %v1206 = vrot.slane %v1173, %v1205
    %v1208 = vmul.f32 %v1200, %v1206
    %v1209 = vmul.f32 %v1201, %v1206
    %v1211 = vlaneseq
    %v1212 = vshrl.u32 %v1211, 7
    %v1213 = vsub.s32 0, %v1212
    %v1214 = vrot.slane %v1174, %v1213
    %v1216 = vadd.f32 %v1208, %v1214
    %v1217 = vadd.f32 %v1209, %v1214
    %v1218 = vsel %vm631, %v1216, 0.0
    %v1219 = vsel %vm632, %v1217, 0.0
    %v1220 = vpack.c.bf16 %v1219, %v1218
    %v1221 = vld [vmem:[%s8] sm:$0xf]
    %v1222 = vld [vmem:[%s8 + $0x4] sm:$0xf]
    %v1223 = vld [vmem:[%s8 + $0x8] sm:$0xf]
    %v1224 = vld [vmem:[%s8 + $0xc] sm:$0xf]
    %v1225 = vld [vmem:[%s9] sm:$0x1]
    %v1227 = vlaneseq
    %v1228 = vshrl.u32 %v1227, 7
    %v1229 = vsub.s32 0, %v1228
    %v1230 = vrot.slane %v1225, %v1229
    %v1236 = vunpack.c.l.b16 %v1221
    %v1237 = vunpack.c.l.b16 %v1222
    %v1238 = vunpack.c.l.b16 %v1223
    %v1239 = vunpack.c.l.b16 %v1224
    %v1240 = vpack.c.b16 %v1237, %v1236
    %v1241 = vpack.c.b16 %v1239, %v1238
    %v1245 = vsel %vm84, %v1220, 0
    %1247 = vmatprep.subr.bf16.mxu0 0
    %1248 = vmatpush1.bf16.msra.mxu0 %v1240
    %1249 = vmatprep.subr.bf16.mxu0 0
    %1250 = vmatpush1.bf16.msra.mxu0 %v1241
    %1251 = vmatprep.subr.bf16.mxu0 0
    %1252 = vmatpush1.bf16.msra.mxu0 0
    %1253 = vmatprep.subr.bf16.mxu0 0
    %1254 = vmatpush1.bf16.msra.mxu0 0
    %1255 = vmatprep.subr.bf16.mxu0 0
    %1256 = vmatpush1.bf16.msra.mxu0 0
    %1257 = vmatprep.subr.bf16.mxu0 0
    %1258 = vmatpush1.bf16.msra.mxu0 0
    %1259 = vmatprep.subr.bf16.mxu0 0
    %1260 = vmatpush1.bf16.msra.mxu0 0
    %1261 = vmatprep.subr.bf16.mxu0 0
    %1262 = vmatpush1.bf16.msra.mxu0 0
    %1263 = vmatprep.subr.bf16.mxu0 0
    %1264 = vmatpush1.bf16.msra.mxu0 0
    %1265 = vmatprep.subr.bf16.mxu0 0
    %1266 = vmatpush1.bf16.msra.mxu0 0
    %1267 = vmatprep.subr.bf16.mxu0 0
    %1268 = vmatpush1.bf16.msra.mxu0 0
    %1269 = vmatprep.subr.bf16.mxu0 0
    %1270 = vmatpush1.bf16.msra.mxu0 0
    %1271 = vmatprep.subr.bf16.mxu0 0
    %1272 = vmatpush1.bf16.msra.mxu0 0
    %1273 = vmatprep.subr.bf16.mxu0 0
    %1274 = vmatpush1.bf16.msra.mxu0 0
    %1275 = vmatprep.subr.bf16.mxu0 0
    %1276 = vmatpush1.bf16.msra.mxu0 0
    %1277 = vmatprep.subr.bf16.mxu0 0
    %1278 = vmatpush1.bf16.msra.mxu0 0
    %1279 = vmatprep.mubr.bf16.mxu0 0
    %1280 = vmatmul.mubr.bf16.gmra.mrb[0].mxu0 %v1245
    %v1281 = vpop.f32.mrb[0].mxu0
    %v1282 = vadd.f32 %v1230, %v1281
    %v1283 = vpop.f32.mrb[0].mxu0
    %v1284 = vpop.f32.mrb[0].mxu0
    %v1285 = vadd.f32 %v1230, %v1284
    %v1286 = vpop.f32.mrb[0].mxu0
    %1287 = vdwg.mxu0
    %v1288 = vmul.f32 %v1282, 0.5
    %v1289 = vmul.f32 %v1285, 0.5
    %v1290 = vmul.f32 %v1282, 0.044715
    %v1291 = vmul.f32 %v1285, 0.044715
    %v1292 = vmul.f32 %v1290, %v1282
    %v1293 = vmul.f32 %v1291, %v1285
    %v1294 = vmul.f32 %v1292, %v1282
    %v1295 = vmul.f32 %v1293, %v1285
    %v1296 = vadd.f32 %v1282, %v1294
    %v1297 = vadd.f32 %v1285, %v1295
    %v1298 = vmul.f32 %v1296, 0.7978846
    %v1299 = vmul.f32 %v1297, 0.7978846
    %v1300 = vtanh.pop %v1298
    %v1301 = vtanh.pop %v1299
    %v1302 = vadd.f32 %v1300, 1.0
    %v1303 = vadd.f32 %v1301, 1.0
    %v1304 = vmul.f32 %v1288, %v1302
    %v1305 = vmul.f32 %v1289, %v1303
    %v1306 = vpack.c.bf16 %v1305, %v1304
    %v1307 = vld [vmem:[%s10] sm:$0xf]
    %v1308 = vld [vmem:[%s10 + $0x4] sm:$0xf]
    %v1309 = vld [vmem:[%s10 + $0x8] sm:$0xf]
    %v1310 = vld [vmem:[%s10 + $0xc] sm:$0xf]
    %v1311 = vld [vmem:[%s10 + $0x10] sm:$0xf]
    %v1312 = vld [vmem:[%s10 + $0x14] sm:$0xf]
    %v1313 = vld [vmem:[%s10 + $0x18] sm:$0xf]
    %v1314 = vld [vmem:[%s10 + $0x1c] sm:$0xf]
    %v1315 = vld [vmem:[%s10 + $0x20] sm:$0xf]
    %v1316 = vld [vmem:[%s10 + $0x24] sm:$0xf]
    %v1317 = vld [vmem:[%s10 + $0x28] sm:$0xf]
    %v1318 = vld [vmem:[%s10 + $0x2c] sm:$0xf]
    %v1319 = vld [vmem:[%s10 + $0x30] sm:$0xf]
    %v1320 = vld [vmem:[%s10 + $0x34] sm:$0xf]
    %v1321 = vld [vmem:[%s10 + $0x38] sm:$0xf]
    %v1322 = vld [vmem:[%s10 + $0x3c] sm:$0xf]
    %v1323 = vld [vmem:[%s11] sm:$0x1]
    %v1325 = vlaneseq
    %v1326 = vshrl.u32 %v1325, 7
    %v1327 = vsub.s32 0, %v1326
    %v1328 = vrot.slane %v1323, %v1327
    %v1346 = vunpack.c.l.b16 %v1307
    %v1347 = vunpack.c.l.b16 %v1308
    %v1348 = vunpack.c.l.b16 %v1309
    %v1349 = vunpack.c.l.b16 %v1310
    %v1350 = vunpack.c.l.b16 %v1311
    %v1351 = vunpack.c.l.b16 %v1312
    %v1352 = vunpack.c.l.b16 %v1313
    %v1353 = vunpack.c.l.b16 %v1314
    %v1354 = vunpack.c.l.b16 %v1315
    %v1355 = vunpack.c.l.b16 %v1316
    %v1356 = vunpack.c.l.b16 %v1317
    %v1357 = vunpack.c.l.b16 %v1318
    %v1358 = vunpack.c.l.b16 %v1319
    %v1359 = vunpack.c.l.b16 %v1320
    %v1360 = vunpack.c.l.b16 %v1321
    %v1361 = vunpack.c.l.b16 %v1322
    %v1362 = vpack.c.b16 %v1347, %v1346
    %v1363 = vpack.c.b16 %v1349, %v1348
    %v1364 = vpack.c.b16 %v1351, %v1350
    %v1365 = vpack.c.b16 %v1353, %v1352
    %v1366 = vpack.c.b16 %v1355, %v1354
    %v1367 = vpack.c.b16 %v1357, %v1356
    %v1368 = vpack.c.b16 %v1359, %v1358
    %v1369 = vpack.c.b16 %v1361, %v1360
    %1378 = vmatprep.subr.bf16.mxu0 0
    %1379 = vmatpush1.bf16.msra.mxu0 %v1362
    %1380 = vmatprep.subr.bf16.mxu0 0
    %1381 = vmatpush1.bf16.msra.mxu0 %v1363
    %1382 = vmatprep.subr.bf16.mxu0 0
    %1383 = vmatpush1.bf16.msra.mxu0 %v1364
    %1384 = vmatprep.subr.bf16.mxu0 0
    %1385 = vmatpush1.bf16.msra.mxu0 %v1365
    %1386 = vmatprep.subr.bf16.mxu0 0
    %1387 = vmatpush1.bf16.msra.mxu0 %v1366
    %1388 = vmatprep.subr.bf16.mxu0 0
    %1389 = vmatpush1.bf16.msra.mxu0 %v1367
    %1390 = vmatprep.subr.bf16.mxu0 0
    %1391 = vmatpush1.bf16.msra.mxu0 %v1368
    %1392 = vmatprep.subr.bf16.mxu0 0
    %1393 = vmatpush1.bf16.msra.mxu0 %v1369
    %1394 = vmatprep.subr.bf16.mxu0 0
    %1395 = vmatpush1.bf16.msra.mxu0 0
    %1396 = vmatprep.subr.bf16.mxu0 0
    %1397 = vmatpush1.bf16.msra.mxu0 0
    %1398 = vmatprep.subr.bf16.mxu0 0
    %1399 = vmatpush1.bf16.msra.mxu0 0
    %1400 = vmatprep.subr.bf16.mxu0 0
    %1401 = vmatpush1.bf16.msra.mxu0 0
    %1402 = vmatprep.subr.bf16.mxu0 0
    %1403 = vmatpush1.bf16.msra.mxu0 0
    %1404 = vmatprep.subr.bf16.mxu0 0
    %1405 = vmatpush1.bf16.msra.mxu0 0
    %1406 = vmatprep.subr.bf16.mxu0 0
    %1407 = vmatpush1.bf16.msra.mxu0 0
    %1408 = vmatprep.subr.bf16.mxu0 0
    %1409 = vmatpush1.bf16.msra.mxu0 0
    %1410 = vmatprep.mubr.bf16.mxu0 0
    %1411 = vmatmul.mubr.bf16.gmra.mrb[0].mxu0 %v1306
    %v1412 = vpop.f32.mrb[0].mxu0
    %v1413 = vadd.f32 %v1328, %v1412
    %v1414 = vpop.f32.mrb[0].mxu0
    %v1415 = vpop.f32.mrb[0].mxu0
    %v1416 = vadd.f32 %v1328, %v1415
    %v1417 = vpop.f32.mrb[0].mxu0
    %1418 = vdwg.mxu0
    %v1419 = vadd.f32 %v1218, %v1413
    %v1420 = vadd.f32 %v1219, %v1416
    %v1421 = vld [vmem:[%s12] sm:$0x1]
    %v1422 = vld [vmem:[%s13] sm:$0x1]
    %v1423 = vsel %vm84, %v1419, 0.0
    %1424 = vadd.xlane.f32.xlu0 %v1423
    %v1425 = vpop.xlane.xlu0 %1424
    %v1426 = vsel %vm84, %v1420, 0.0
    %1427 = vadd.xlane.f32.xlu0 %v1426
    %v1428 = vpop.xlane.xlu0 %1427
    %v1429 = vmul.f32 %v1425, %v1181
    %v1430 = vmul.f32 %v1428, %v1181
    %v1431 = vsub.f32 %v1419, %v1429
    %v1432 = vsub.f32 %v1420, %v1430
    %v1433 = vmul.f32 %v1431, %v1431
    %v1434 = vmul.f32 %v1432, %v1432
    %v1435 = vsel %vm84, %v1433, 0.0
    %1436 = vadd.xlane.f32.xlu0 %v1435
    %v1437 = vpop.xlane.xlu0 %1436
    %v1438 = vsel %vm84, %v1434, 0.0
    %1439 = vadd.xlane.f32.xlu0 %v1438
    %v1440 = vpop.xlane.xlu0 %1439
    %v1441 = vmul.f32 %v1437, %v1181
    %v1442 = vmul.f32 %v1440, %v1181
    %v1443 = vadd.f32 %v1441, 1e-05
    %v1444 = vadd.f32 %v1442, 1e-05
    %v1445 = vrsqrt.pop %v1443
    %v1446 = vrsqrt.pop %v1444
    %v1447 = vmul.f32 %v1431, %v1445
    %v1448 = vmul.f32 %v1432, %v1446
    %v1450 = vlaneseq
    %v1451 = vshrl.u32 %v1450, 7
    %v1452 = vsub.s32 0, %v1451
    %v1453 = vrot.slane %v1421, %v1452
    %v1455 = vmul.f32 %v1447, %v1453
    %v1456 = vmul.f32 %v1448, %v1453
    %v1458 = vlaneseq
    %v1459 = vshrl.u32 %v1458, 7
    %v1460 = vsub.s32 0, %v1459
    %v1461 = vrot.slane %v1422, %v1460
    %v1463 = vadd.f32 %v1455, %v1461
    %v1464 = vadd.f32 %v1456, %v1461
    %v1465 = vsel %vm631, %v1463, 0.0
    %v1466 = vsel %vm632, %v1464, 0.0
    %1467 = vst.msk [vmem:[#allocation5] sm:$0xff] %vm84, %v1465
    %1468 = vst.msk [vmem:[#allocation5 + $0x8] sm:$0xff] %vm84, %v1466
    // Predicated region
    $region54: #{tpu_custom_call.1} parent=1 // pred_check
      _
    $region55: #{tpu_custom_call.1} parent=1 // pred_check_branch
      %1470 = sbr.rel (0) target = $region57
    $region56: #{tpu_custom_call.1} parent=1 // pred_region
      %s1472 = ssub.s32 256, 256
      %1473 = vsyncadd [#allocation6], %s1472
      %s1474 = sshll.u32 [#allocation5], 4
      %s1475 = int_to_ptr.vmem [resolvable:$true] %s1474
      %1480 = dma.vmem_to_hbm [thread:$0]  %s1475, 256, %s14, [#allocation6], 128, 128, 8
    $region57: #{tpu_custom_call.1} parent=1 // pred_fallthru
      _
    // Predicated region
    $region58: #{tpu_custom_call.1} parent=1 // pred_check
      _
    $region59: #{tpu_custom_call.1} parent=1 // pred_check_branch
      %1482 = sbr.rel (0) target = $region61
    $region60: #{tpu_custom_call.1} parent=1 // pred_region
      %1483 = dma.done [#allocation6], 256
    $region61: #{tpu_custom_call.1} parent=1 // pred_fallthru
      _
    %1484 = vsyncpa [#allocation6], 1

</llo_original>
